<compile_context>
chip_gen: v7x
topology: tpu7x:2x2x1
jax: 0.10.0
libtpu: 0.0.40
codegen_flags: <defaults>
</compile_context>

<pallas_src>
import functools

import jax
import jax.numpy as jnp
from jax.experimental import pallas as pl
from jax.experimental.pallas import tpu as pltpu

LANE = 128
MiB = 1024 * 1024


def _round_up(n, m):
    return ((n + m - 1) // m) * m


def _pad2(a, rows, cols, dtype=jnp.float32):
    out = jnp.zeros((rows, cols), dtype)
    return out.at[: a.shape[0], : a.shape[1]].set(a.astype(dtype))


def _vmem_capacity_bytes():
    try:
        return int(pltpu.get_tpu_info().vmem_capacity_bytes)
    except Exception:
        return 64 * MiB  # conservative (v7x-sized) fallback


def _use_bf16_elementwise():
    """bf16 VALUs exist on v6e/v7x; keep f32 elementwise on older generations."""
    try:
        kind = jax.devices()[0].device_kind.lower()
    except Exception:
        return True
    for tag in ("v2", "v3", "v4", "v5 lite", "v5lite", "v5e"):
        if tag in kind:
            return False
    return True


def _spec(shape, index_map, resident=False, single_buffer=False):
    """BlockSpec helper; resident inputs optionally single-buffered."""
    if resident and single_buffer:
        return pl.BlockSpec(shape, index_map, pipeline_mode=pl.Buffered(1))
    return pl.BlockSpec(shape, index_map)


# --------------------------------------------------------------------------
# Kernel 1: encoder + reparameterize, gridded over the input_dim contraction
# --------------------------------------------------------------------------
def encoder_kernel(x_ref, eps_ref, w1_ref, b1_ref, w2_ref, b2_ref,
                   wmv_ref, bmv_ref, z_ref, zmean_ref, zlogvar_ref, acc_ref):
    bf16, f32 = jnp.bfloat16, jnp.float32
    k = pl.program_id(0)

    @pl.when(k == 0)
    def _():
        acc_ref[...] = jnp.zeros_like(acc_ref)

    # Stream the input_dim contraction:  acc += x_tile @ w1_tile  (MXU, f32 acc)
    acc_ref[...] += jnp.dot(x_ref[...].astype(bf16), w1_ref[...],
                            preferred_element_type=f32)

    @pl.when(k == pl.num_programs(0) - 1)
    def _():
        h = jnp.maximum(acc_ref[...] + b1_ref[...], 0.0)
        h = jnp.dot(h.astype(bf16), w2_ref[...], preferred_element_type=f32)
        h = jnp.maximum(h + b2_ref[...], 0.0)
        # Fused [z_mean | z_log_var] heads: one (Hp, 2L) matmul, static split.
        mv = jnp.dot(h.astype(bf16), wmv_ref[...], preferred_element_type=f32)
        mv = mv + bmv_ref[...]
        Lp = zmean_ref.shape[1]
        z_mean = mv[:, :Lp]
        z_log_var = mv[:, Lp:]
        zmean_ref[...] = z_mean
        zlogvar_ref[...] = z_log_var
        z_ref[...] = z_mean + eps_ref[...] * jnp.exp(0.5 * z_log_var)


# --------------------------------------------------------------------------
# Kernel 2: decoder, gridded over output-column tiles of size dt
# --------------------------------------------------------------------------
def decoder_kernel(z_ref, mask_ref, g1_ref, g2t_ref, gb2_ref, cwt_ref, cb_ref,
                   xmean_ref, *, use_bf16_elem):
    bf16, f32 = jnp.bfloat16, jnp.float32
    B, Lp = z_ref.shape
    dt = mask_ref.shape[0]

    mask = mask_ref[...]                                    # (dt, Lp) bf16
    if use_bf16_elem:
        zb = z_ref[...].astype(bf16)                        # (B, Lp)
        masked = (zb[:, None, :] * mask[None, :, :]).reshape(B * dt, Lp)
    else:
        masked = z_ref[...][:, None, :] * mask[None, :, :].astype(f32)
        masked = masked.reshape(B * dt, Lp).astype(bf16)

    # (B*dt, Hp) = masked @ G1   (MXU, f32 accumulate)
    h1 = jnp.dot(masked, g1_ref[...], preferred_element_type=f32)
    if use_bf16_elem:
        h1 = jnp.maximum(h1.astype(bf16), 0)
    else:
        h1 = jnp.maximum(h1, 0.0).astype(bf16)

    # Second matmul computed transposed so Hp lands on sublanes:
    #   h2t[o, r] = sum_k G2[k, o] * h1[r, k]  ==  contract minor dims of
    #   (G2^T, h1) -- the natively supported MXU orientation (like q.k^T).
    h2t = jax.lax.dot_general(g2t_ref[...], h1,
                              (((1,), (1,)), ((), ())),
                              preferred_element_type=f32)    # (Hp, B*dt)
    h2t = jnp.maximum(h2t + gb2_ref[...], 0.0)               # bias column bcast

    # Per-column Linear(H, 1): multiply by cw^T and reduce over Hp, which now
    # sits on sublanes -> cross-vreg VPU adds + 3-step sublane reduce; the
    # result lands directly in lane-dense (B, dt) layout (no lane reduce,
    # no transpose, unmasked store).  Kept f32 for accuracy of the reduction.
    cwt = cwt_ref[...].astype(f32)                           # (Hp, dt)
    rows = []
    for b in range(B):                                       # B is small & static
        hw = h2t[:, b * dt:(b + 1) * dt] * cwt
        rows.append(jnp.sum(hw, axis=0, keepdims=True))      # (1, dt)
    cols = jnp.concatenate(rows, axis=0)                     # (B, dt)
    xmean_ref[...] = cols + cb_ref[...]


# --------------------------------------------------------------------------
# Tile sizing against a generation-aware VMEM budget
# --------------------------------------------------------------------------
def _pick_enc_k_tile(Dp, B, Lp, Hp, budget_bytes):
    n = Dp // LANE
    resident = (2 * (4 * B * Lp + 4 * Hp + 2 * Hp * Hp + 4 * Hp
                     + 2 * Hp * 2 * Lp + 4 * 2 * Lp)
                + 4 * B * Hp + 3 * 4 * B * Lp)

    def est(dk):
        return resident + 2 * (4 * B * dk + 2 * dk * Hp)     # dbl-buffered tiles

    best = LANE
    for k in range(1, n + 1):
        if n % k == 0 and est(LANE * k) <= budget_bytes:
            best = LANE * k
    return best, est(best)


def _pick_dec_d_tile(Dp, B, Lp, Hp, budget_bytes):
    n = Dp // LANE
    resident = 2 * (4 * B * Lp + 2 * Lp * Hp + 2 * Hp * Hp + 4 * Hp)

    def est(dt):
        tiled = 2 * (2 * dt * Lp + 2 * Hp * dt + 4 * dt + 4 * B * dt)
        inter = B * dt * (4 * Lp + 12 * Hp)                   # staged intermediates
        return resident + tiled + inter

    # keep >= 2 grid steps when Dp allows (pipelining + v7x dual-core sharding)
    max_k = n if n < 2 else max(1, n // 2)
    best = LANE
    for k in range(1, max_k + 1):
        if n % k == 0 and est(LANE * k) <= budget_bytes:
            best = LANE * k
    return best, est(best)


# --------------------------------------------------------------------------
# pallas_call builders (with / without single-buffered residents)
# --------------------------------------------------------------------------
def _run_encoder(x_p, eps_p, pp, B, Dp, Lp, Hp, dk, vmem_limit, single_buffer):
    f32 = jnp.float32
    flops = 2 * B * (Dp * Hp + Hp * Hp + Hp * 2 * Lp)
    bytes_acc = (4 * B * (Dp + Lp) + 2 * (Dp * Hp + Hp * Hp + 2 * Hp * Lp)
                 + 4 * (2 * Hp + 2 * Lp) + 3 * 4 * B * Lp)
    return pl.pallas_call(
        encoder_kernel,
        out_shape=(jax.ShapeDtypeStruct((B, Lp), f32),
                   jax.ShapeDtypeStruct((B, Lp), f32),
                   jax.ShapeDtypeStruct((B, Lp), f32)),
        grid_spec=pltpu.PrefetchScalarGridSpec(
            num_scalar_prefetch=0,
            grid=(Dp // dk,),
            in_specs=[
                pl.BlockSpec((B, dk), lambda k: (0, k)),                     # x tile
                _spec((B, Lp), lambda k: (0, 0), True, single_buffer),       # eps
                pl.BlockSpec((dk, Hp), lambda k: (k, 0)),                    # w1 tile
                _spec((1, Hp), lambda k: (0, 0), True, single_buffer),       # b1
                _spec((Hp, Hp), lambda k: (0, 0), True, single_buffer),      # w2
                _spec((1, Hp), lambda k: (0, 0), True, single_buffer),       # b2
                _spec((Hp, 2 * Lp), lambda k: (0, 0), True, single_buffer),  # wmv
                _spec((1, 2 * Lp), lambda k: (0, 0), True, single_buffer),   # bmv
            ],
            out_specs=(pl.BlockSpec((B, Lp), lambda k: (0, 0)),
                       pl.BlockSpec((B, Lp), lambda k: (0, 0)),
                       pl.BlockSpec((B, Lp), lambda k: (0, 0))),
            scratch_shapes=[pltpu.VMEM((B, Hp), f32)],
        ),
        compiler_params=pltpu.CompilerParams(
            dimension_semantics=("arbitrary",),         # reduction over input_dim
            vmem_limit_bytes=int(vmem_limit)),
        cost_estimate=pl.CostEstimate(flops=int(flops),
                                      transcendentals=int(B * Lp),
                                      bytes_accessed=int(bytes_acc)),
    )(x_p, eps_p, pp["w1"], pp["b1"], pp["w2"], pp["b2"], pp["wmv"], pp["bmv"])


def _run_decoder(z_p, pp, B, Dp, Lp, Hp, dt, vmem_limit, use_bf16_elem,
                 single_buffer):
    f32 = jnp.float32
    kern = functools.partial(decoder_kernel, use_bf16_elem=use_bf16_elem)
    flops = 2 * B * Dp * (Lp * Hp + Hp * Hp + Hp)
    bytes_acc = (4 * B * Lp + 2 * Dp * Lp + 2 * Lp * Hp + 2 * Hp * Hp + 4 * Hp
                 + 2 * Dp * Hp + 4 * Dp + 4 * B * Dp)
    return pl.pallas_call(
        kern,
        out_shape=jax.ShapeDtypeStruct((B, Dp), f32),
        grid_spec=pltpu.PrefetchScalarGridSpec(
            num_scalar_prefetch=0,
            grid=(Dp // dt,),
            in_specs=[
                _spec((B, Lp), lambda d: (0, 0), True, single_buffer),   # z
                pl.BlockSpec((dt, Lp), lambda d: (d, 0)),                # mask tile (bf16)
                _spec((Lp, Hp), lambda d: (0, 0), True, single_buffer),  # G1
                _spec((Hp, Hp), lambda d: (0, 0), True, single_buffer),  # G2^T
                _spec((Hp, 1), lambda d: (0, 0), True, single_buffer),   # G2 bias col
                pl.BlockSpec((Hp, dt), lambda d: (0, d)),                # cw^T tile (bf16)
                pl.BlockSpec((1, dt), lambda d: (0, d)),                 # cb tile
            ],
            out_specs=pl.BlockSpec((B, dt), lambda d: (0, d)),
        ),
        compiler_params=pltpu.CompilerParams(
            dimension_semantics=("parallel",),           # D tiles across TCs / pipeline
            vmem_limit_bytes=int(vmem_limit)),
        cost_estimate=pl.CostEstimate(flops=int(flops), transcendentals=0,
                                      bytes_accessed=int(bytes_acc)),
    )(z_p, pp["mask"], pp["g1"], pp["g2t"], pp["gb2"], pp["cwt"], pp["cb"])


# --------------------------------------------------------------------------
# Wrapper
# --------------------------------------------------------------------------
def sparse_vae_forward(x, eps, pp, input_dim, latent_dim):
    B = x.shape[0]
    Dp, Lp = pp["mask"].shape
    Hp = pp["g2t"].shape[0]

    x_p = _pad2(x, B, Dp, jnp.float32)
    eps_p = _pad2(eps, B, Lp, jnp.float32)

    cap = _vmem_capacity_bytes()
    budget = cap // 3
    use_bf16 = _use_bf16_elementwise()

    dk, enc_est = _pick_enc_k_tile(Dp, B, Lp, Hp, budget)
    enc_limit = min(int(cap * 0.85), max(cap // 2, int(enc_est * 1.5)))
    try:
        enc_out = _run_encoder(x_p, eps_p, pp, B, Dp, Lp, Hp, dk, enc_limit, True)
    except Exception:
        enc_out = _run_encoder(x_p, eps_p, pp, B, Dp, Lp, Hp, dk, enc_limit, False)
    z_p, zmean_p, zlogvar_p = enc_out

    dt, dec_est = _pick_dec_d_tile(Dp, B, Lp, Hp, budget)
    dec_limit = min(int(cap * 0.85), max(cap // 2, int(dec_est * 1.5)))
    try:
        x_mean_p = _run_decoder(z_p, pp, B, Dp, Lp, Hp, dt, dec_limit, use_bf16, True)
    except Exception:
        x_mean_p = _run_decoder(z_p, pp, B, Dp, Lp, Hp, dt, dec_limit, use_bf16, False)

    return (x_mean_p[:, :input_dim],
            z_p[:, :latent_dim],
            zmean_p[:, :latent_dim],
            zlogvar_p[:, :latent_dim])


# --------------------------------------------------------------------------
# Parameter init (torch-module layout: weights as [in, out]) + padding
# --------------------------------------------------------------------------
def init_params(key, input_dim, latent_dim, hidden_dim):
    ks = jax.random.split(key, 12)
    s = lambda n: 1.0 / jnp.sqrt(jnp.float32(n))
    p = {}
    p["w1"] = jax.random.normal(ks[0], (input_dim, hidden_dim), jnp.float32) * s(input_dim)
    p["b1"] = jax.random.normal(ks[1], (1, hidden_dim), jnp.float32) * 0.01
    p["w2"] = jax.random.normal(ks[2], (hidden_dim, hidden_dim), jnp.float32) * s(hidden_dim)
    p["b2"] = jax.random.normal(ks[3], (1, hidden_dim), jnp.float32) * 0.01
    p["wm"] = jax.random.normal(ks[4], (hidden_dim, latent_dim), jnp.float32) * s(hidden_dim)
    p["bm"] = jax.random.normal(ks[5], (1, latent_dim), jnp.float32) * 0.01
    p["wv"] = jax.random.normal(ks[6], (hidden_dim, latent_dim), jnp.float32) * s(hidden_dim)
    p["bv"] = jax.random.normal(ks[7], (1, latent_dim), jnp.float32) * 0.01
    p["g1"] = jax.random.normal(ks[8], (latent_dim, hidden_dim), jnp.float32) * s(latent_dim)
    p["g2"] = jax.random.normal(ks[9], (hidden_dim, hidden_dim), jnp.float32) * s(hidden_dim)
    p["gb2"] = jax.random.normal(ks[10], (1, hidden_dim), jnp.float32) * 0.01
    kcw, kcb, kw = jax.random.split(ks[11], 3)
    p["cw"] = jax.random.normal(kcw, (input_dim, hidden_dim), jnp.float32) * s(hidden_dim)
    p["cb"] = jax.random.normal(kcb, (1, input_dim), jnp.float32) * 0.01
    # TODO(synk): get_generator_mask() is abstract in the base class; use the
    # deterministic stand-in mask = sigmoid(W).
    W = jax.random.normal(kw, (input_dim, latent_dim), jnp.float32)
    p["mask"] = jax.nn.sigmoid(W)
    return p


def prepare_padded_params(params):
    """One-time: zero-pad D/L/H to multiples of 128; bf16 weights/mask/cw;
    pre-transpose G2 and cw for the transposed decoder orientation."""
    D, L = params["mask"].shape
    H = params["g2"].shape[0]
    Dp, Lp, Hp = _round_up(D, LANE), _round_up(L, LANE), _round_up(H, LANE)
    bf, f32 = jnp.bfloat16, jnp.float32
    return {
        "w1": _pad2(params["w1"], Dp, Hp, bf),
        "b1": _pad2(params["b1"], 1, Hp, f32),
        "w2": _pad2(params["w2"], Hp, Hp, bf),
        "b2": _pad2(params["b2"], 1, Hp, f32),
        "wmv": jnp.concatenate([_pad2(params["wm"], Hp, Lp, bf),
                                _pad2(params["wv"], Hp, Lp, bf)], axis=1),
        "bmv": jnp.concatenate([_pad2(params["bm"], 1, Lp, f32),
                                _pad2(params["bv"], 1, Lp, f32)], axis=1),
        "mask": _pad2(params["mask"], Dp, Lp, bf),                 # bf16 (DMA /2)
        "g1": _pad2(params["g1"], Lp, Hp, bf),
        "g2t": jnp.transpose(_pad2(params["g2"], Hp, Hp, bf)),     # (Hp_out, Hp_in)
        "gb2": jnp.transpose(_pad2(params["gb2"], 1, Hp, f32)),    # (Hp, 1) column
        "cwt": jnp.transpose(_pad2(params["cw"], Dp, Hp, bf)),     # (Hp, Dp) bf16
        "cb": _pad2(params["cb"], 1, Dp, f32),
    }


# --------------------------------------------------------------------------
# Pure-JAX reference (same bf16-matmul / f32-accumulate plan, unpadded)
# --------------------------------------------------------------------------
def reference_forward(x, eps, params):
    bf, f32 = jnp.bfloat16, jnp.float32
    dot = lambda a, b: jnp.dot(a.astype(bf), b.astype(bf), preferred_element_type=f32)
    h = jnp.maximum(dot(x, params["w1"]) + params["b1"], 0.0)
    h = jnp.maximum(dot(h, params["w2"]) + params["b2"], 0.0)
    z_mean = dot(h, params["wm"]) + params["bm"]
    z_log_var = dot(h, params["wv"]) + params["bv"]
    z = z_mean + eps * jnp.exp(0.5 * z_log_var)
    D = params["mask"].shape[0]
    cols = []
    for j in range(D):
        m = z * params["mask"][j]
        g = jnp.maximum(dot(m, params["g1"]), 0.0)
        g = jnp.maximum(dot(g, params["g2"]) + params["gb2"], 0.0)
        cols.append(jnp.sum(g * params["cw"][j], axis=-1) + params["cb"][0, j])
    x_mean = jnp.stack(cols, axis=1)
    return x_mean, z, z_mean, z_log_var


if __name__ == "__main__":
    batch_size, input_dim, latent_dim, hidden_dim = 8, 8, 8, 32

    key = jax.random.PRNGKey(0)
    k_x, k_eps, k_p = jax.random.split(key, 3)

    x = jax.random.normal(k_x, (batch_size, input_dim), jnp.float32)
    eps = jax.random.normal(k_eps, (batch_size, latent_dim), jnp.float32)
    params = init_params(k_p, input_dim, latent_dim, hidden_dim)
    padded = prepare_padded_params(params)

    outs = sparse_vae_forward(x, eps, padded, input_dim, latent_dim)
    jax.block_until_ready(outs)
    x_mean, z, z_mean, z_log_var = outs

    assert x_mean.shape == (batch_size, input_dim)
    assert z.shape == (batch_size, latent_dim)
    assert z_mean.shape == (batch_size, latent_dim)
    assert z_log_var.shape == (batch_size, latent_dim)

    rx, rz, rzm, rzlv = reference_forward(x, eps, params)
    for got, want in ((x_mean, rx), (z, rz), (z_mean, rzm), (z_log_var, rzlv)):
        assert float(jnp.max(jnp.abs(got - want))) < 5e-2

    print("KERNEL_OK")
</pallas_src>

<mosaic_0001>
module attributes {stable_mosaic.version = 11 : i64} {
  func.func @encoder_kernel(%arg0: i32, %arg1: memref<8x128xf32, #tpu.memory_space<vmem>>, %arg2: memref<8x128xf32, #tpu.memory_space<vmem>>, %arg3: memref<128x128xbf16, #tpu.memory_space<vmem>>, %arg4: memref<1x128xf32, #tpu.memory_space<vmem>>, %arg5: memref<128x128xbf16, #tpu.memory_space<vmem>>, %arg6: memref<1x128xf32, #tpu.memory_space<vmem>>, %arg7: memref<128x256xbf16, #tpu.memory_space<vmem>>, %arg8: memref<1x256xf32, #tpu.memory_space<vmem>>, %arg9: memref<8x128xf32, #tpu.memory_space<vmem>>, %arg10: memref<8x128xf32, #tpu.memory_space<vmem>>, %arg11: memref<8x128xf32, #tpu.memory_space<vmem>>, %arg12: memref<8x128xf32, #tpu.memory_space<vmem>>) attributes {dimension_semantics = [#tpu.dimension_semantics<arbitrary>], iteration_bounds = array<i64: 1>, scalar_prefetch = 0 : i64, scratch_operands = 1 : i64, tpu.core_type = #tpu.core_type<tc>, window_params = [{transform_indices = @transform_0, window_bounds = array<i64: 8, 128>}, {pipeline_mode = #tpu.pipeline_mode<synchronous>, transform_indices = @transform_1, window_bounds = array<i64: 8, 128>}, {transform_indices = @transform_2, window_bounds = array<i64: 128, 128>}, {pipeline_mode = #tpu.pipeline_mode<synchronous>, transform_indices = @transform_3, window_bounds = array<i64: 1, 128>}, {pipeline_mode = #tpu.pipeline_mode<synchronous>, transform_indices = @transform_4, window_bounds = array<i64: 128, 128>}, {pipeline_mode = #tpu.pipeline_mode<synchronous>, transform_indices = @transform_5, window_bounds = array<i64: 1, 128>}, {pipeline_mode = #tpu.pipeline_mode<synchronous>, transform_indices = @transform_6, window_bounds = array<i64: 128, 256>}, {pipeline_mode = #tpu.pipeline_mode<synchronous>, transform_indices = @transform_7, window_bounds = array<i64: 1, 256>}, {pipeline_mode = #tpu.pipeline_mode<synchronous>, transform_indices = @transform_8, window_bounds = array<i64: 8, 128>}, {pipeline_mode = #tpu.pipeline_mode<synchronous>, transform_indices = @transform_9, window_bounds = array<i64: 8, 128>}, {pipeline_mode = #tpu.pipeline_mode<synchronous>, transform_indices = @transform_10, window_bounds = array<i64: 8, 128>}]} {
    %c0_i32 = arith.constant 0 : i32
    %0 = arith.cmpi eq, %arg0, %c0_i32 : i32
    %1 = arith.extui %0 : i1 to i32
    %c0_i32_0 = arith.constant 0 : i32
    %2 = arith.cmpi ne, %1, %c0_i32_0 : i32
    scf.if %2 {
      %cst_10 = arith.constant 0.000000e+00 : f32
      %13 = vector.broadcast %cst_10 : f32 to vector<8x128xf32>
      %c0_11 = arith.constant 0 : index
      %c0_12 = arith.constant 0 : index
      %14 = vector.load %arg12[%c0_11, %c0_12] : memref<8x128xf32, #tpu.memory_space<vmem>>, vector<8x128xf32>
      tpu.vector_store %arg12[%c0_11, %c0_12], %13 {strides = array<i32>} : memref<8x128xf32, #tpu.memory_space<vmem>>, vector<8x128xf32>,
    } else {
    }
    %c0 = arith.constant 0 : index
    %c0_1 = arith.constant 0 : index
    %3 = vector.load %arg12[%c0, %c0_1] : memref<8x128xf32, #tpu.memory_space<vmem>>, vector<8x128xf32>
    %c0_2 = arith.constant 0 : index
    %c0_3 = arith.constant 0 : index
    %4 = vector.load %arg1[%c0_2, %c0_3] : memref<8x128xf32, #tpu.memory_space<vmem>>, vector<8x128xf32>
    %5 = arith.truncf %4 : vector<8x128xf32> to vector<8x128xbf16>
    %c0_4 = arith.constant 0 : index
    %c0_5 = arith.constant 0 : index
    %6 = vector.load %arg3[%c0_4, %c0_5] : memref<128x128xbf16, #tpu.memory_space<vmem>>, vector<128x128xbf16>
    %cst = arith.constant dense<0.000000e+00> : vector<8x128xf32>
    %7 = tpu.matmul %5, %6, %cst {dimension_numbers = #tpu.dot_dimension_numbers<[1], [0], [0], [1], [0, 0, 1, 1], [], []>} : vector<8x128xbf16>, vector<128x128xbf16>, vector<8x128xf32> -> vector<8x128xf32>
    %8 = arith.addf %3, %7 : vector<8x128xf32>
    %c0_6 = arith.constant 0 : index
    %c0_7 = arith.constant 0 : index
    %9 = vector.load %arg12[%c0_6, %c0_7] : memref<8x128xf32, #tpu.memory_space<vmem>>, vector<8x128xf32>
    tpu.vector_store %arg12[%c0_6, %c0_7], %8 {strides = array<i32>} : memref<8x128xf32, #tpu.memory_space<vmem>>, vector<8x128xf32>,
    %c0_i32_8 = arith.constant 0 : i32
    %10 = arith.cmpi eq, %arg0, %c0_i32_8 : i32
    %11 = arith.extui %10 : i1 to i32
    %c0_i32_9 = arith.constant 0 : i32
    %12 = arith.cmpi ne, %11, %c0_i32_9 : i32
    scf.if %12 {
      %c0_10 = arith.constant 0 : index
      %c0_11 = arith.constant 0 : index
      %13 = vector.load %arg12[%c0_10, %c0_11] : memref<8x128xf32, #tpu.memory_space<vmem>>, vector<8x128xf32>
      %c0_12 = arith.constant 0 : index
      %c0_13 = arith.constant 0 : index
      %14 = vector.load %arg4[%c0_12, %c0_13] : memref<1x128xf32, #tpu.memory_space<vmem>>, vector<1x128xf32>
      %15 = vector.broadcast %14 : vector<1x128xf32> to vector<8x128xf32>
      %16 = arith.addf %13, %15 : vector<8x128xf32>
      %cst_14 = arith.constant 0.000000e+00 : f32
      %17 = vector.broadcast %cst_14 : f32 to vector<8x128xf32>
      %18 = arith.maximumf %16, %17 : vector<8x128xf32>
      %19 = arith.truncf %18 : vector<8x128xf32> to vector<8x128xbf16>
      %c0_15 = arith.constant 0 : index
      %c0_16 = arith.constant 0 : index
      %20 = vector.load %arg5[%c0_15, %c0_16] : memref<128x128xbf16, #tpu.memory_space<vmem>>, vector<128x128xbf16>
      %cst_17 = arith.constant dense<0.000000e+00> : vector<8x128xf32>
      %21 = tpu.matmul %19, %20, %cst_17 {dimension_numbers = #tpu.dot_dimension_numbers<[1], [0], [0], [1], [0, 0, 1, 1], [], []>} : vector<8x128xbf16>, vector<128x128xbf16>, vector<8x128xf32> -> vector<8x128xf32>
      %c0_18 = arith.constant 0 : index
      %c0_19 = arith.constant 0 : index
      %22 = vector.load %arg6[%c0_18, %c0_19] : memref<1x128xf32, #tpu.memory_space<vmem>>, vector<1x128xf32>
      %23 = vector.broadcast %22 : vector<1x128xf32> to vector<8x128xf32>
      %24 = arith.addf %21, %23 : vector<8x128xf32>
      %cst_20 = arith.constant 0.000000e+00 : f32
      %25 = vector.broadcast %cst_20 : f32 to vector<8x128xf32>
      %26 = arith.maximumf %24, %25 : vector<8x128xf32>
      %27 = arith.truncf %26 : vector<8x128xf32> to vector<8x128xbf16>
      %c0_21 = arith.constant 0 : index
      %c0_22 = arith.constant 0 : index
      %28 = vector.load %arg7[%c0_21, %c0_22] : memref<128x256xbf16, #tpu.memory_space<vmem>>, vector<128x256xbf16>
      %cst_23 = arith.constant dense<0.000000e+00> : vector<8x256xf32>
      %29 = tpu.matmul %27, %28, %cst_23 {dimension_numbers = #tpu.dot_dimension_numbers<[1], [0], [0], [1], [0, 0, 1, 1], [], []>} : vector<8x128xbf16>, vector<128x256xbf16>, vector<8x256xf32> -> vector<8x256xf32>
      %c0_24 = arith.constant 0 : index
      %c0_25 = arith.constant 0 : index
      %30 = vector.load %arg8[%c0_24, %c0_25] : memref<1x256xf32, #tpu.memory_space<vmem>>, vector<1x256xf32>
      %31 = vector.broadcast %30 : vector<1x256xf32> to vector<8x256xf32>
      %32 = arith.addf %29, %31 : vector<8x256xf32>
      %33 = vector.extract_strided_slice %32 {offsets = [0, 0], sizes = [8, 128], strides = [1, 1]} : vector<8x256xf32> to vector<8x128xf32>
      %34 = vector.extract_strided_slice %32 {offsets = [0, 128], sizes = [8, 128], strides = [1, 1]} : vector<8x256xf32> to vector<8x128xf32>
      %c0_26 = arith.constant 0 : index
      %c0_27 = arith.constant 0 : index
      %35 = vector.load %arg10[%c0_26, %c0_27] : memref<8x128xf32, #tpu.memory_space<vmem>>, vector<8x128xf32>
      tpu.vector_store %arg10[%c0_26, %c0_27], %33 {strides = array<i32>} : memref<8x128xf32, #tpu.memory_space<vmem>>, vector<8x128xf32>,
      %c0_28 = arith.constant 0 : index
      %c0_29 = arith.constant 0 : index
      %36 = vector.load %arg11[%c0_28, %c0_29] : memref<8x128xf32, #tpu.memory_space<vmem>>, vector<8x128xf32>
      tpu.vector_store %arg11[%c0_28, %c0_29], %34 {strides = array<i32>} : memref<8x128xf32, #tpu.memory_space<vmem>>, vector<8x128xf32>,
      %c0_30 = arith.constant 0 : index
      %c0_31 = arith.constant 0 : index
      %37 = vector.load %arg2[%c0_30, %c0_31] : memref<8x128xf32, #tpu.memory_space<vmem>>, vector<8x128xf32>
      %cst_32 = arith.constant 5.000000e-01 : f32
      %38 = vector.broadcast %cst_32 : f32 to vector<8x128xf32>
      %39 = arith.mulf %38, %34 : vector<8x128xf32>
      %40 = math.exp %39 : vector<8x128xf32>
      %41 = arith.mulf %37, %40 : vector<8x128xf32>
      %42 = arith.addf %33, %41 : vector<8x128xf32>
      %c0_33 = arith.constant 0 : index
      %c0_34 = arith.constant 0 : index
      %43 = vector.load %arg9[%c0_33, %c0_34] : memref<8x128xf32, #tpu.memory_space<vmem>>, vector<8x128xf32>
      tpu.vector_store %arg9[%c0_33, %c0_34], %42 {strides = array<i32>} : memref<8x128xf32, #tpu.memory_space<vmem>>, vector<8x128xf32>,
    } else {
    }
    return
  }
  func.func @transform_0(%arg0: i32) -> (i32, i32) {
    %c0_i32 = arith.constant 0 : i32
    %c0_i32_0 = arith.constant 0 : i32
    return %c0_i32, %arg0 : i32, i32
  }
  func.func @transform_1(%arg0: i32) -> (i32, i32) {
    %c0_i32 = arith.constant 0 : i32
    %c0_i32_0 = arith.constant 0 : i32
    %c0_i32_1 = arith.constant 0 : i32
    return %c0_i32, %c0_i32_0 : i32, i32
  }
  func.func @transform_2(%arg0: i32) -> (i32, i32) {
    %c0_i32 = arith.constant 0 : i32
    %c0_i32_0 = arith.constant 0 : i32
    return %arg0, %c0_i32 : i32, i32
  }
  func.func @transform_3(%arg0: i32) -> (i32, i32) {
    %c0_i32 = arith.constant 0 : i32
    %c0_i32_0 = arith.constant 0 : i32
    %c0_i32_1 = arith.constant 0 : i32
    return %c0_i32, %c0_i32_0 : i32, i32
  }
  func.func @transform_4(%arg0: i32) -> (i32, i32) {
    %c0_i32 = arith.constant 0 : i32
    %c0_i32_0 = arith.constant 0 : i32
    %c0_i32_1 = arith.constant 0 : i32
    return %c0_i32, %c0_i32_0 : i32, i32
  }
  func.func @transform_5(%arg0: i32) -> (i32, i32) {
    %c0_i32 = arith.constant 0 : i32
    %c0_i32_0 = arith.constant 0 : i32
    %c0_i32_1 = arith.constant 0 : i32
    return %c0_i32, %c0_i32_0 : i32, i32
  }
  func.func @transform_6(%arg0: i32) -> (i32, i32) {
    %c0_i32 = arith.constant 0 : i32
    %c0_i32_0 = arith.constant 0 : i32
    %c0_i32_1 = arith.constant 0 : i32
    return %c0_i32, %c0_i32_0 : i32, i32
  }
  func.func @transform_7(%arg0: i32) -> (i32, i32) {
    %c0_i32 = arith.constant 0 : i32
    %c0_i32_0 = arith.constant 0 : i32
    %c0_i32_1 = arith.constant 0 : i32
    return %c0_i32, %c0_i32_0 : i32, i32
  }
  func.func @transform_8(%arg0: i32) -> (i32, i32) {
    %c0_i32 = arith.constant 0 : i32
    %c0_i32_0 = arith.constant 0 : i32
    %c0_i32_1 = arith.constant 0 : i32
    return %c0_i32, %c0_i32_0 : i32, i32
  }
  func.func @transform_9(%arg0: i32) -> (i32, i32) {
    %c0_i32 = arith.constant 0 : i32
    %c0_i32_0 = arith.constant 0 : i32
    %c0_i32_1 = arith.constant 0 : i32
    return %c0_i32, %c0_i32_0 : i32, i32
  }
  func.func @transform_10(%arg0: i32) -> (i32, i32) {
    %c0_i32 = arith.constant 0 : i32
    %c0_i32_0 = arith.constant 0 : i32
    %c0_i32_1 = arith.constant 0 : i32
    return %c0_i32, %c0_i32_0 : i32, i32
  }
}

module attributes {stable_mosaic.version = 11 : i64} {
  func.func @encoder_kernel(%arg0: i32, %arg1: memref<8x128xf32, #tpu.memory_space<vmem>>, %arg2: memref<8x128xf32, #tpu.memory_space<vmem>>, %arg3: memref<128x128xbf16, #tpu.memory_space<vmem>>, %arg4: memref<1x128xf32, #tpu.memory_space<vmem>>, %arg5: memref<128x128xbf16, #tpu.memory_space<vmem>>, %arg6: memref<1x128xf32, #tpu.memory_space<vmem>>, %arg7: memref<128x256xbf16, #tpu.memory_space<vmem>>, %arg8: memref<1x256xf32, #tpu.memory_space<vmem>>, %arg9: memref<8x128xf32, #tpu.memory_space<vmem>>, %arg10: memref<8x128xf32, #tpu.memory_space<vmem>>, %arg11: memref<8x128xf32, #tpu.memory_space<vmem>>, %arg12: memref<8x128xf32, #tpu.memory_space<vmem>>) attributes {dimension_semantics = [#tpu.dimension_semantics<arbitrary>], iteration_bounds = array<i64: 1>, scalar_prefetch = 0 : i64, scratch_operands = 1 : i64, tpu.core_type = #tpu.core_type<tc>, window_params = [{transform_indices = @transform_0, window_bounds = array<i64: 8, 128>}, {pipeline_mode = #tpu.pipeline_mode<synchronous>, transform_indices = @transform_1, window_bounds = array<i64: 8, 128>}, {transform_indices = @transform_2, window_bounds = array<i64: 128, 128>}, {pipeline_mode = #tpu.pipeline_mode<synchronous>, transform_indices = @transform_3, window_bounds = array<i64: 1, 128>}, {pipeline_mode = #tpu.pipeline_mode<synchronous>, transform_indices = @transform_4, window_bounds = array<i64: 128, 128>}, {pipeline_mode = #tpu.pipeline_mode<synchronous>, transform_indices = @transform_5, window_bounds = array<i64: 1, 128>}, {pipeline_mode = #tpu.pipeline_mode<synchronous>, transform_indices = @transform_6, window_bounds = array<i64: 128, 256>}, {pipeline_mode = #tpu.pipeline_mode<synchronous>, transform_indices = @transform_7, window_bounds = array<i64: 1, 256>}, {pipeline_mode = #tpu.pipeline_mode<synchronous>, transform_indices = @transform_8, window_bounds = array<i64: 8, 128>}, {pipeline_mode = #tpu.pipeline_mode<synchronous>, transform_indices = @transform_9, window_bounds = array<i64: 8, 128>}, {pipeline_mode = #tpu.pipeline_mode<synchronous>, transform_indices = @transform_10, window_bounds = array<i64: 8, 128>}]} {
    %c0_i32 = arith.constant 0 : i32
    %0 = arith.cmpi eq, %arg0, %c0_i32 : i32
    %1 = arith.extui %0 : i1 to i32
    %c0_i32_0 = arith.constant 0 : i32
    %2 = arith.cmpi ne, %1, %c0_i32_0 : i32
    scf.if %2 {
      %cst_10 = arith.constant 0.000000e+00 : f32
      %13 = vector.broadcast %cst_10 : f32 to vector<8x128xf32>
      %c0_11 = arith.constant 0 : index
      %c0_12 = arith.constant 0 : index
      %14 = vector.load %arg12[%c0_11, %c0_12] : memref<8x128xf32, #tpu.memory_space<vmem>>, vector<8x128xf32>
      tpu.vector_store %arg12[%c0_11, %c0_12], %13 {strides = array<i32>} : memref<8x128xf32, #tpu.memory_space<vmem>>, vector<8x128xf32>,
    } else {
    }
    %c0 = arith.constant 0 : index
    %c0_1 = arith.constant 0 : index
    %3 = vector.load %arg12[%c0, %c0_1] : memref<8x128xf32, #tpu.memory_space<vmem>>, vector<8x128xf32>
    %c0_2 = arith.constant 0 : index
    %c0_3 = arith.constant 0 : index
    %4 = vector.load %arg1[%c0_2, %c0_3] : memref<8x128xf32, #tpu.memory_space<vmem>>, vector<8x128xf32>
    %5 = arith.truncf %4 : vector<8x128xf32> to vector<8x128xbf16>
    %c0_4 = arith.constant 0 : index
    %c0_5 = arith.constant 0 : index
    %6 = vector.load %arg3[%c0_4, %c0_5] : memref<128x128xbf16, #tpu.memory_space<vmem>>, vector<128x128xbf16>
    %cst = arith.constant dense<0.000000e+00> : vector<8x128xf32>
    %7 = tpu.matmul %5, %6, %cst {dimension_numbers = #tpu.dot_dimension_numbers<[1], [0], [0], [1], [0, 0, 1, 1], [], []>} : vector<8x128xbf16>, vector<128x128xbf16>, vector<8x128xf32> -> vector<8x128xf32>
    %8 = arith.addf %3, %7 : vector<8x128xf32>
    %c0_6 = arith.constant 0 : index
    %c0_7 = arith.constant 0 : index
    %9 = vector.load %arg12[%c0_6, %c0_7] : memref<8x128xf32, #tpu.memory_space<vmem>>, vector<8x128xf32>
    tpu.vector_store %arg12[%c0_6, %c0_7], %8 {strides = array<i32>} : memref<8x128xf32, #tpu.memory_space<vmem>>, vector<8x128xf32>,
    %c0_i32_8 = arith.constant 0 : i32
    %10 = arith.cmpi eq, %arg0, %c0_i32_8 : i32
    %11 = arith.extui %10 : i1 to i32
    %c0_i32_9 = arith.constant 0 : i32
    %12 = arith.cmpi ne, %11, %c0_i32_9 : i32
    scf.if %12 {
      %c0_10 = arith.constant 0 : index
      %c0_11 = arith.constant 0 : index
      %13 = vector.load %arg12[%c0_10, %c0_11] : memref<8x128xf32, #tpu.memory_space<vmem>>, vector<8x128xf32>
      %c0_12 = arith.constant 0 : index
      %c0_13 = arith.constant 0 : index
      %14 = vector.load %arg4[%c0_12, %c0_13] : memref<1x128xf32, #tpu.memory_space<vmem>>, vector<1x128xf32>
      %15 = vector.broadcast %14 : vector<1x128xf32> to vector<8x128xf32>
      %16 = arith.addf %13, %15 : vector<8x128xf32>
      %cst_14 = arith.constant 0.000000e+00 : f32
      %17 = vector.broadcast %cst_14 : f32 to vector<8x128xf32>
      %18 = arith.maximumf %16, %17 : vector<8x128xf32>
      %19 = arith.truncf %18 : vector<8x128xf32> to vector<8x128xbf16>
      %c0_15 = arith.constant 0 : index
      %c0_16 = arith.constant 0 : index
      %20 = vector.load %arg5[%c0_15, %c0_16] : memref<128x128xbf16, #tpu.memory_space<vmem>>, vector<128x128xbf16>
      %cst_17 = arith.constant dense<0.000000e+00> : vector<8x128xf32>
      %21 = tpu.matmul %19, %20, %cst_17 {dimension_numbers = #tpu.dot_dimension_numbers<[1], [0], [0], [1], [0, 0, 1, 1], [], []>} : vector<8x128xbf16>, vector<128x128xbf16>, vector<8x128xf32> -> vector<8x128xf32>
      %c0_18 = arith.constant 0 : index
      %c0_19 = arith.constant 0 : index
      %22 = vector.load %arg6[%c0_18, %c0_19] : memref<1x128xf32, #tpu.memory_space<vmem>>, vector<1x128xf32>
      %23 = vector.broadcast %22 : vector<1x128xf32> to vector<8x128xf32>
      %24 = arith.addf %21, %23 : vector<8x128xf32>
      %cst_20 = arith.constant 0.000000e+00 : f32
      %25 = vector.broadcast %cst_20 : f32 to vector<8x128xf32>
      %26 = arith.maximumf %24, %25 : vector<8x128xf32>
      %27 = arith.truncf %26 : vector<8x128xf32> to vector<8x128xbf16>
      %c0_21 = arith.constant 0 : index
      %c0_22 = arith.constant 0 : index
      %28 = vector.load %arg7[%c0_21, %c0_22] : memref<128x256xbf16, #tpu.memory_space<vmem>>, vector<128x256xbf16>
      %cst_23 = arith.constant dense<0.000000e+00> : vector<8x256xf32>
      %29 = tpu.matmul %27, %28, %cst_23 {dimension_numbers = #tpu.dot_dimension_numbers<[1], [0], [0], [1], [0, 0, 1, 1], [], []>} : vector<8x128xbf16>, vector<128x256xbf16>, vector<8x256xf32> -> vector<8x256xf32>
      %c0_24 = arith.constant 0 : index
      %c0_25 = arith.constant 0 : index
      %30 = vector.load %arg8[%c0_24, %c0_25] : memref<1x256xf32, #tpu.memory_space<vmem>>, vector<1x256xf32>
      %31 = vector.broadcast %30 : vector<1x256xf32> to vector<8x256xf32>
      %32 = arith.addf %29, %31 : vector<8x256xf32>
      %33 = vector.extract_strided_slice %32 {offsets = [0, 0], sizes = [8, 128], strides = [1, 1]} : vector<8x256xf32> to vector<8x128xf32>
      %34 = vector.extract_strided_slice %32 {offsets = [0, 128], sizes = [8, 128], strides = [1, 1]} : vector<8x256xf32> to vector<8x128xf32>
      %c0_26 = arith.constant 0 : index
      %c0_27 = arith.constant 0 : index
      %35 = vector.load %arg10[%c0_26, %c0_27] : memref<8x128xf32, #tpu.memory_space<vmem>>, vector<8x128xf32>
      tpu.vector_store %arg10[%c0_26, %c0_27], %33 {strides = array<i32>} : memref<8x128xf32, #tpu.memory_space<vmem>>, vector<8x128xf32>,
      %c0_28 = arith.constant 0 : index
      %c0_29 = arith.constant 0 : index
      %36 = vector.load %arg11[%c0_28, %c0_29] : memref<8x128xf32, #tpu.memory_space<vmem>>, vector<8x128xf32>
      tpu.vector_store %arg11[%c0_28, %c0_29], %34 {strides = array<i32>} : memref<8x128xf32, #tpu.memory_space<vmem>>, vector<8x128xf32>,
      %c0_30 = arith.constant 0 : index
      %c0_31 = arith.constant 0 : index
      %37 = vector.load %arg2[%c0_30, %c0_31] : memref<8x128xf32, #tpu.memory_space<vmem>>, vector<8x128xf32>
      %cst_32 = arith.constant 5.000000e-01 : f32
      %38 = vector.broadcast %cst_32 : f32 to vector<8x128xf32>
      %39 = arith.mulf %38, %34 : vector<8x128xf32>
      %40 = math.exp %39 : vector<8x128xf32>
      %41 = arith.mulf %37, %40 : vector<8x128xf32>
      %42 = arith.addf %33, %41 : vector<8x128xf32>
      %c0_33 = arith.constant 0 : index
      %c0_34 = arith.constant 0 : index
      %43 = vector.load %arg9[%c0_33, %c0_34] : memref<8x128xf32, #tpu.memory_space<vmem>>, vector<8x128xf32>
      tpu.vector_store %arg9[%c0_33, %c0_34], %42 {strides = array<i32>} : memref<8x128xf32, #tpu.memory_space<vmem>>, vector<8x128xf32>,
    } else {
    }
    return
  }
  func.func @transform_0(%arg0: i32) -> (i32, i32) {
    %c0_i32 = arith.constant 0 : i32
    %c0_i32_0 = arith.constant 0 : i32
    return %c0_i32, %arg0 : i32, i32
  }
  func.func @transform_1(%arg0: i32) -> (i32, i32) {
    %c0_i32 = arith.constant 0 : i32
    %c0_i32_0 = arith.constant 0 : i32
    %c0_i32_1 = arith.constant 0 : i32
    return %c0_i32, %c0_i32_0 : i32, i32
  }
  func.func @transform_2(%arg0: i32) -> (i32, i32) {
    %c0_i32 = arith.constant 0 : i32
    %c0_i32_0 = arith.constant 0 : i32
    return %arg0, %c0_i32 : i32, i32
  }
  func.func @transform_3(%arg0: i32) -> (i32, i32) {
    %c0_i32 = arith.constant 0 : i32
    %c0_i32_0 = arith.constant 0 : i32
    %c0_i32_1 = arith.constant 0 : i32
    return %c0_i32, %c0_i32_0 : i32, i32
  }
  func.func @transform_4(%arg0: i32) -> (i32, i32) {
    %c0_i32 = arith.constant 0 : i32
    %c0_i32_0 = arith.constant 0 : i32
    %c0_i32_1 = arith.constant 0 : i32
    return %c0_i32, %c0_i32_0 : i32, i32
  }
  func.func @transform_5(%arg0: i32) -> (i32, i32) {
    %c0_i32 = arith.constant 0 : i32
    %c0_i32_0 = arith.constant 0 : i32
    %c0_i32_1 = arith.constant 0 : i32
    return %c0_i32, %c0_i32_0 : i32, i32
  }
  func.func @transform_6(%arg0: i32) -> (i32, i32) {
    %c0_i32 = arith.constant 0 : i32
    %c0_i32_0 = arith.constant 0 : i32
    %c0_i32_1 = arith.constant 0 : i32
    return %c0_i32, %c0_i32_0 : i32, i32
  }
  func.func @transform_7(%arg0: i32) -> (i32, i32) {
    %c0_i32 = arith.constant 0 : i32
    %c0_i32_0 = arith.constant 0 : i32
    %c0_i32_1 = arith.constant 0 : i32
    return %c0_i32, %c0_i32_0 : i32, i32
  }
  func.func @transform_8(%arg0: i32) -> (i32, i32) {
    %c0_i32 = arith.constant 0 : i32
    %c0_i32_0 = arith.constant 0 : i32
    %c0_i32_1 = arith.constant 0 : i32
    return %c0_i32, %c0_i32_0 : i32, i32
  }
  func.func @transform_9(%arg0: i32) -> (i32, i32) {
    %c0_i32 = arith.constant 0 : i32
    %c0_i32_0 = arith.constant 0 : i32
    %c0_i32_1 = arith.constant 0 : i32
    return %c0_i32, %c0_i32_0 : i32, i32
  }
  func.func @transform_10(%arg0: i32) -> (i32, i32) {
    %c0_i32 = arith.constant 0 : i32
    %c0_i32_0 = arith.constant 0 : i32
    %c0_i32_1 = arith.constant 0 : i32
    return %c0_i32, %c0_i32_0 : i32, i32
  }
}

</mosaic_0001>

<llo_original>
// kernel: tpu_custom_call.1
$region0: #{tpu_custom_call.1}
  #allocation0 [shape = 'u32[]', space=smem, size = 0x4, offset = 0x4, fixed_abs, tag = 'smem constant byte address 0x4 - core index']
  #allocation1 [shape = 'u32[144,128]{1,0:T(1,128)}', space=vmem, size = 0x12000, scoped, tag = 'internal scratch']
  #allocation2 [shape = 'f32[8,128]{1,0:T(8,128)}', space=vmem, size = 0x1000, scoped, tag = 'scratch operand']
  %s0 = inlined_call_operand.hbm [shape: f32[8,128], index: 0, kind: input, shape index: {}]
  %s1 = inlined_call_operand.hbm [shape: f32[8,128], index: 1, kind: input, shape index: {}]
  %s2 = inlined_call_operand.hbm [shape: bf16[128,128], index: 2, kind: input, shape index: {}]
  %s3 = inlined_call_operand.vmem [shape: f32[1,128], index: 3, kind: input, shape index: {}]
  %s4 = inlined_call_operand.hbm [shape: bf16[128,128], index: 4, kind: input, shape index: {}]
  %s5 = inlined_call_operand.vmem [shape: f32[1,128], index: 5, kind: input, shape index: {}]
  %s6 = inlined_call_operand.hbm [shape: bf16[128,256], index: 6, kind: input, shape index: {}]
  %s7 = inlined_call_operand.vmem [shape: f32[1,256], index: 7, kind: input, shape index: {}]
  %s8 = inlined_call_operand.hbm [shape: f32[8,128], index: 8, kind: output, shape index: {0}]
  %s9 = inlined_call_operand.hbm [shape: f32[8,128], index: 9, kind: output, shape index: {1}]
  %s10 = inlined_call_operand.hbm [shape: f32[8,128], index: 10, kind: output, shape index: {2}]
  %11 = xla_tuple %s8, %s9, %s10
  %s12 = sld [smem:[#allocation0]]
  $region86: #{tpu_custom_call.1} parent=0
    _
  %s14 = ssub.s32 1, %s12
  %s15 = scalar_select 0, %s14, %s12
  $region1: #{tpu_custom_call.1} parent=0
    #allocation3 [shape = 'u8[4096]{0}', space=vmem, size = 0x1000, scoped, tag = 'input window, operand 0, single buffered']
    #allocation4 [shape = 's32[1]{0}', space=sflag, size = 0x4, scoped, tag = 'scoped memory for tpu_custom_call.1']
    #allocation5 [shape = 's32[1]{0}', space=sflag, size = 0x4, scoped, tag = 'scoped memory for tpu_custom_call.1']
    #allocation6 [shape = 'u8[4096]{0}', space=vmem, size = 0x1000, scoped, tag = 'input window, operand 1, single buffered']
    #allocation7 [shape = 's32[1]{0}', space=sflag, size = 0x4, scoped, tag = 'scoped memory for tpu_custom_call.1']
    #allocation8 [shape = 'u8[32768]{0}', space=vmem, size = 0x8000, scoped, tag = 'input window, operand 2, single buffered']
    #allocation9 [shape = 'u8[32768]{0}', space=vmem, size = 0x8000, scoped, tag = 'input window, operand 4, single buffered']
    #allocation10 [shape = 's32[1]{0}', space=sflag, size = 0x4, scoped, tag = 'scoped memory for tpu_custom_call.1']
    #allocation11 [shape = 'u8[65536]{0}', space=vmem, size = 0x10000, scoped, tag = 'input window, operand 6, single buffered']
    #allocation12 [shape = 'u8[4096]{0}', space=vmem, size = 0x1000, scoped, tag = 'output window, operand 0, single buffered']
    #allocation13 [shape = 'u8[4096]{0}', space=vmem, size = 0x1000, scoped, tag = 'output window, operand 1, single buffered']
    #allocation14 [shape = 's32[1]{0}', space=sflag, size = 0x4, scoped, tag = 'scoped memory for tpu_custom_call.1']
    #allocation15 [shape = 'u8[4096]{0}', space=vmem, size = 0x1000, scoped, tag = 'output window, operand 2, single buffered']
    %16 = vsyncpa [#allocation4], 0
    %17 = vsyncpa [#allocation7], 0
    %18 = vsyncpa [#allocation10], 0
    %19 = vsyncpa [#allocation5], 0
    %20 = vsyncpa [#allocation14], 0
    // Predicated region
    $region2: #{tpu_custom_call.1} parent=1 // pred_check
      _
    $region3: #{tpu_custom_call.1} parent=1 // pred_check_branch
      %22 = sbr.rel (0) target = $region5
    $region4: #{tpu_custom_call.1} parent=1 // pred_region
      %s24 = ssub.s32 128, 128
      %25 = vsyncadd [#allocation4], %s24
      %s27 = sshll.u32 [#allocation3], 4
      %s28 = int_to_ptr.vmem [resolvable:$true] %s27
      %30 = dma.hbm_to_vmem [thread:$0]  %s0, 128, %s28, [#allocation4]
    $region5: #{tpu_custom_call.1} parent=1 // pred_fallthru
      _
    // Predicated region
    $region6: #{tpu_custom_call.1} parent=1 // pred_check
      _
    $region7: #{tpu_custom_call.1} parent=1 // pred_check_branch
      %32 = sbr.rel (0) target = $region9
    $region8: #{tpu_custom_call.1} parent=1 // pred_region
      %s34 = ssub.s32 128, 128
      %35 = vsyncadd [#allocation7], %s34
      %s37 = sshll.u32 [#allocation6], 4
      %s38 = int_to_ptr.vmem [resolvable:$true] %s37
      %40 = dma.hbm_to_vmem [thread:$0]  %s1, 128, %s38, [#allocation7]
    $region9: #{tpu_custom_call.1} parent=1 // pred_fallthru
      _
    // Predicated region
    $region10: #{tpu_custom_call.1} parent=1 // pred_check
      _
    $region11: #{tpu_custom_call.1} parent=1 // pred_check_branch
      %42 = sbr.rel (0) target = $region13
    $region12: #{tpu_custom_call.1} parent=1 // pred_region
      %s44 = ssub.s32 1024, 1024
      %45 = vsyncadd [#allocation7], %s44
      %s46 = sshll.u32 [#allocation8], 4
      %s47 = int_to_ptr.vmem [resolvable:$true] %s46
      %52 = dma.hbm_to_vmem [thread:$0]  %s2, 1024, %s47, [#allocation7], 64, 64, 4
    $region13: #{tpu_custom_call.1} parent=1 // pred_fallthru
      _
    // Predicated region
    $region14: #{tpu_custom_call.1} parent=1 // pred_check
      _
    $region15: #{tpu_custom_call.1} parent=1 // pred_check_branch
      %54 = sbr.rel (0) target = $region17
    $region16: #{tpu_custom_call.1} parent=1 // pred_region
      _
    $region17: #{tpu_custom_call.1} parent=1 // pred_fallthru
      _
    // Predicated region
    $region18: #{tpu_custom_call.1} parent=1 // pred_check
      _
    $region19: #{tpu_custom_call.1} parent=1 // pred_check_branch
      %56 = sbr.rel (0) target = $region21
    $region20: #{tpu_custom_call.1} parent=1 // pred_region
      %s58 = ssub.s32 1024, 1024
      %59 = vsyncadd [#allocation10], %s58
      %s60 = sshll.u32 [#allocation9], 4
      %s61 = int_to_ptr.vmem [resolvable:$true] %s60
      %66 = dma.hbm_to_vmem [thread:$0]  %s4, 1024, %s61, [#allocation10], 64, 64, 4
    $region21: #{tpu_custom_call.1} parent=1 // pred_fallthru
      _
    // Predicated region
    $region22: #{tpu_custom_call.1} parent=1 // pred_check
      _
    $region23: #{tpu_custom_call.1} parent=1 // pred_check_branch
      %68 = sbr.rel (0) target = $region25
    $region24: #{tpu_custom_call.1} parent=1 // pred_region
      _
    $region25: #{tpu_custom_call.1} parent=1 // pred_fallthru
      _
    // Predicated region
    $region26: #{tpu_custom_call.1} parent=1 // pred_check
      _
    $region27: #{tpu_custom_call.1} parent=1 // pred_check_branch
      %70 = sbr.rel (0) target = $region29
    $region28: #{tpu_custom_call.1} parent=1 // pred_region
      %s72 = ssub.s32 2048, 2048
      %73 = vsyncadd [#allocation10], %s72
      %s74 = sshll.u32 [#allocation11], 4
      %s75 = int_to_ptr.vmem [resolvable:$true] %s74
      %80 = dma.hbm_to_vmem [thread:$0]  %s6, 2048, %s75, [#allocation10], 128, 128, 8
    $region29: #{tpu_custom_call.1} parent=1 // pred_fallthru
      _
    // Predicated region
    $region30: #{tpu_custom_call.1} parent=1 // pred_check
      _
    $region31: #{tpu_custom_call.1} parent=1 // pred_check_branch
      %82 = sbr.rel (0) target = $region33
    $region32: #{tpu_custom_call.1} parent=1 // pred_region
      _
    $region33: #{tpu_custom_call.1} parent=1 // pred_fallthru
      _
    // Predicated region
    $region34: #{tpu_custom_call.1} parent=1 // pred_check
      _
    $region35: #{tpu_custom_call.1} parent=1 // pred_check_branch
      %84 = sbr.rel (0) target = $region37
    $region36: #{tpu_custom_call.1} parent=1 // pred_region
      %85 = dma.done [#allocation4], 128
    $region37: #{tpu_custom_call.1} parent=1 // pred_fallthru
      _
    // Predicated region
    $region38: #{tpu_custom_call.1} parent=1 // pred_check
      _
    $region39: #{tpu_custom_call.1} parent=1 // pred_check_branch
      %87 = sbr.rel (0) target = $region41
    $region40: #{tpu_custom_call.1} parent=1 // pred_region
      %88 = dma.done [#allocation7], 128
    $region41: #{tpu_custom_call.1} parent=1 // pred_fallthru
      _
    // Predicated region
    $region42: #{tpu_custom_call.1} parent=1 // pred_check
      _
    $region43: #{tpu_custom_call.1} parent=1 // pred_check_branch
      %90 = sbr.rel (0) target = $region45
    $region44: #{tpu_custom_call.1} parent=1 // pred_region
      %91 = dma.done [#allocation7], 1024
    $region45: #{tpu_custom_call.1} parent=1 // pred_fallthru
      _
    // Predicated region
    $region46: #{tpu_custom_call.1} parent=1 // pred_check
      _
    $region47: #{tpu_custom_call.1} parent=1 // pred_check_branch
      %93 = sbr.rel (0) target = $region49
    $region48: #{tpu_custom_call.1} parent=1 // pred_region
      %94 = dma.done [#allocation10], 1024
    $region49: #{tpu_custom_call.1} parent=1 // pred_fallthru
      _
    // Predicated region
    $region50: #{tpu_custom_call.1} parent=1 // pred_check
      _
    $region51: #{tpu_custom_call.1} parent=1 // pred_check_branch
      %96 = sbr.rel (0) target = $region53
    $region52: #{tpu_custom_call.1} parent=1 // pred_region
      %97 = dma.done [#allocation10], 2048
    $region53: #{tpu_custom_call.1} parent=1 // pred_fallthru
      _
    %p99 = scmp.eq.s32.totalorder 0, 0
    // Predicated region
    $region54: #{tpu_custom_call.1} parent=1 // pred_check
      %p100 = pneg %p99
    $region55: #{tpu_custom_call.1} parent=1 // pred_check_branch
      %102 = sbr.rel (%p100) target = $region57
    $region56: #{tpu_custom_call.1} parent=1 // pred_region
      %103 = vst [vmem:[#allocation2] sm:$0xff] 0.0
    $region57: #{tpu_custom_call.1} parent=1 // pred_fallthru
      _
    %v104 = vld [vmem:[#allocation2] sm:$0xff]
    %v105 = vld [vmem:[#allocation3] sm:$0xff]
    %v106 = vpack.c.bf16 %v105, %v105
    %v107 = vld [vmem:[#allocation8] sm:$0xf]
    %v108 = vld [vmem:[#allocation8 + $0x4] sm:$0xf]
    %v109 = vld [vmem:[#allocation8 + $0x8] sm:$0xf]
    %v110 = vld [vmem:[#allocation8 + $0xc] sm:$0xf]
    %v111 = vld [vmem:[#allocation8 + $0x10] sm:$0xf]
    %v112 = vld [vmem:[#allocation8 + $0x14] sm:$0xf]
    %v113 = vld [vmem:[#allocation8 + $0x18] sm:$0xf]
    %v114 = vld [vmem:[#allocation8 + $0x1c] sm:$0xf]
    %v115 = vld [vmem:[#allocation8 + $0x20] sm:$0xf]
    %v116 = vld [vmem:[#allocation8 + $0x24] sm:$0xf]
    %v117 = vld [vmem:[#allocation8 + $0x28] sm:$0xf]
    %v118 = vld [vmem:[#allocation8 + $0x2c] sm:$0xf]
    %v119 = vld [vmem:[#allocation8 + $0x30] sm:$0xf]
    %v120 = vld [vmem:[#allocation8 + $0x34] sm:$0xf]
    %v121 = vld [vmem:[#allocation8 + $0x38] sm:$0xf]
    %v122 = vld [vmem:[#allocation8 + $0x3c] sm:$0xf]
    %v139 = vunpack.c.l.b16 %v107
    %v140 = vunpack.c.l.b16 %v108
    %v141 = vunpack.c.l.b16 %v109
    %v142 = vunpack.c.l.b16 %v110
    %v143 = vunpack.c.l.b16 %v111
    %v144 = vunpack.c.l.b16 %v112
    %v145 = vunpack.c.l.b16 %v113
    %v146 = vunpack.c.l.b16 %v114
    %v147 = vunpack.c.l.b16 %v115
    %v148 = vunpack.c.l.b16 %v116
    %v149 = vunpack.c.l.b16 %v117
    %v150 = vunpack.c.l.b16 %v118
    %v151 = vunpack.c.l.b16 %v119
    %v152 = vunpack.c.l.b16 %v120
    %v153 = vunpack.c.l.b16 %v121
    %v154 = vunpack.c.l.b16 %v122
    %v155 = vpack.c.b16 %v140, %v139
    %v156 = vpack.c.b16 %v142, %v141
    %v157 = vpack.c.b16 %v144, %v143
    %v158 = vpack.c.b16 %v146, %v145
    %v159 = vpack.c.b16 %v148, %v147
    %v160 = vpack.c.b16 %v150, %v149
    %v161 = vpack.c.b16 %v152, %v151
    %v162 = vpack.c.b16 %v154, %v153
    %171 = vmatprep.subr.bf16.mxu0 0
    %172 = vmatpush1.bf16.msra.mxu0 %v155
    %173 = vmatprep.subr.bf16.mxu0 0
    %174 = vmatpush1.bf16.msra.mxu0 %v156
    %175 = vmatprep.subr.bf16.mxu0 0
    %176 = vmatpush1.bf16.msra.mxu0 %v157
    %177 = vmatprep.subr.bf16.mxu0 0
    %178 = vmatpush1.bf16.msra.mxu0 %v158
    %179 = vmatprep.subr.bf16.mxu0 0
    %180 = vmatpush1.bf16.msra.mxu0 %v159
    %181 = vmatprep.subr.bf16.mxu0 0
    %182 = vmatpush1.bf16.msra.mxu0 %v160
    %183 = vmatprep.subr.bf16.mxu0 0
    %184 = vmatpush1.bf16.msra.mxu0 %v161
    %185 = vmatprep.subr.bf16.mxu0 0
    %186 = vmatpush1.bf16.msra.mxu0 %v162
    %187 = vmatprep.subr.bf16.mxu0 0
    %188 = vmatpush1.bf16.msra.mxu0 0
    %189 = vmatprep.subr.bf16.mxu0 0
    %190 = vmatpush1.bf16.msra.mxu0 0
    %191 = vmatprep.subr.bf16.mxu0 0
    %192 = vmatpush1.bf16.msra.mxu0 0
    %193 = vmatprep.subr.bf16.mxu0 0
    %194 = vmatpush1.bf16.msra.mxu0 0
    %195 = vmatprep.subr.bf16.mxu0 0
    %196 = vmatpush1.bf16.msra.mxu0 0
    %197 = vmatprep.subr.bf16.mxu0 0
    %198 = vmatpush1.bf16.msra.mxu0 0
    %199 = vmatprep.subr.bf16.mxu0 0
    %200 = vmatpush1.bf16.msra.mxu0 0
    %201 = vmatprep.subr.bf16.mxu0 0
    %202 = vmatpush1.bf16.msra.mxu0 0
    %203 = vmatprep.mubr.bf16.mxu0 0
    %204 = vmatmul.mubr.bf16.gmra.mrb[0].mxu0 %v106
    %v205 = vpop.f32.mrb[0].mxu0
    %v206 = vadd.f32 0.0, %v205
    %v207 = vpop.f32.mrb[0].mxu0
    %v208 = vpop.f32.mrb[0].mxu0
    %v209 = vpop.f32.mrb[0].mxu0
    %210 = vdwg.mxu0
    %v211 = vadd.f32 %v104, %v206
    %212 = vst [vmem:[#allocation2] sm:$0xff] %v211
    // Predicated region
    $region58: #{tpu_custom_call.1} parent=1 // pred_check
      %p213 = pneg %p99
    $region59: #{tpu_custom_call.1} parent=1 // pred_check_branch
      %215 = sbr.rel (%p213) target = $region61
    $region60: #{tpu_custom_call.1} parent=1 // pred_region
      %v216 = vld [vmem:[#allocation2] sm:$0xff]
      %v217 = vld [vmem:[%s3] sm:$0x1]
      %v219 = vlaneseq
      %v220 = vshrl.u32 %v219, 7
      %v221 = vsub.s32 0, %v220
      %v222 = vrot.slane %v217, %v221
      %v224 = vadd.f32 %v216, %v222
      %v225 = vmax.f32 %v224, 0.0
      %v226 = vpack.c.bf16 %v225, %v225
      %v227 = vld [vmem:[#allocation9] sm:$0xf]
      %v228 = vld [vmem:[#allocation9 + $0x4] sm:$0xf]
      %v229 = vld [vmem:[#allocation9 + $0x8] sm:$0xf]
      %v230 = vld [vmem:[#allocation9 + $0xc] sm:$0xf]
      %v231 = vld [vmem:[#allocation9 + $0x10] sm:$0xf]
      %v232 = vld [vmem:[#allocation9 + $0x14] sm:$0xf]
      %v233 = vld [vmem:[#allocation9 + $0x18] sm:$0xf]
      %v234 = vld [vmem:[#allocation9 + $0x1c] sm:$0xf]
      %v235 = vld [vmem:[#allocation9 + $0x20] sm:$0xf]
      %v236 = vld [vmem:[#allocation9 + $0x24] sm:$0xf]
      %v237 = vld [vmem:[#allocation9 + $0x28] sm:$0xf]
      %v238 = vld [vmem:[#allocation9 + $0x2c] sm:$0xf]
      %v239 = vld [vmem:[#allocation9 + $0x30] sm:$0xf]
      %v240 = vld [vmem:[#allocation9 + $0x34] sm:$0xf]
      %v241 = vld [vmem:[#allocation9 + $0x38] sm:$0xf]
      %v242 = vld [vmem:[#allocation9 + $0x3c] sm:$0xf]
      %v243 = vld [vmem:[%s5] sm:$0x1]
      %v245 = vlaneseq
      %v246 = vshrl.u32 %v245, 7
      %v247 = vsub.s32 0, %v246
      %v248 = vrot.slane %v243, %v247
      %v266 = vunpack.c.l.b16 %v227
      %v267 = vunpack.c.l.b16 %v228
      %v268 = vunpack.c.l.b16 %v229
      %v269 = vunpack.c.l.b16 %v230
      %v270 = vunpack.c.l.b16 %v231
      %v271 = vunpack.c.l.b16 %v232
      %v272 = vunpack.c.l.b16 %v233
      %v273 = vunpack.c.l.b16 %v234
      %v274 = vunpack.c.l.b16 %v235
      %v275 = vunpack.c.l.b16 %v236
      %v276 = vunpack.c.l.b16 %v237
      %v277 = vunpack.c.l.b16 %v238
      %v278 = vunpack.c.l.b16 %v239
      %v279 = vunpack.c.l.b16 %v240
      %v280 = vunpack.c.l.b16 %v241
      %v281 = vunpack.c.l.b16 %v242
      %v282 = vpack.c.b16 %v267, %v266
      %v283 = vpack.c.b16 %v269, %v268
      %v284 = vpack.c.b16 %v271, %v270
      %v285 = vpack.c.b16 %v273, %v272
      %v286 = vpack.c.b16 %v275, %v274
      %v287 = vpack.c.b16 %v277, %v276
      %v288 = vpack.c.b16 %v279, %v278
      %v289 = vpack.c.b16 %v281, %v280
      %298 = vmatprep.subr.bf16.mxu0 0
      %299 = vmatpush1.bf16.msra.mxu0 %v282
      %300 = vmatprep.subr.bf16.mxu0 0
      %301 = vmatpush1.bf16.msra.mxu0 %v283
      %302 = vmatprep.subr.bf16.mxu0 0
      %303 = vmatpush1.bf16.msra.mxu0 %v284
      %304 = vmatprep.subr.bf16.mxu0 0
      %305 = vmatpush1.bf16.msra.mxu0 %v285
      %306 = vmatprep.subr.bf16.mxu0 0
      %307 = vmatpush1.bf16.msra.mxu0 %v286
      %308 = vmatprep.subr.bf16.mxu0 0
      %309 = vmatpush1.bf16.msra.mxu0 %v287
      %310 = vmatprep.subr.bf16.mxu0 0
      %311 = vmatpush1.bf16.msra.mxu0 %v288
      %312 = vmatprep.subr.bf16.mxu0 0
      %313 = vmatpush1.bf16.msra.mxu0 %v289
      %314 = vmatprep.subr.bf16.mxu0 0
      %315 = vmatpush1.bf16.msra.mxu0 0
      %316 = vmatprep.subr.bf16.mxu0 0
      %317 = vmatpush1.bf16.msra.mxu0 0
      %318 = vmatprep.subr.bf16.mxu0 0
      %319 = vmatpush1.bf16.msra.mxu0 0
      %320 = vmatprep.subr.bf16.mxu0 0
      %321 = vmatpush1.bf16.msra.mxu0 0
      %322 = vmatprep.subr.bf16.mxu0 0
      %323 = vmatpush1.bf16.msra.mxu0 0
      %324 = vmatprep.subr.bf16.mxu0 0
      %325 = vmatpush1.bf16.msra.mxu0 0
      %326 = vmatprep.subr.bf16.mxu0 0
      %327 = vmatpush1.bf16.msra.mxu0 0
      %328 = vmatprep.subr.bf16.mxu0 0
      %329 = vmatpush1.bf16.msra.mxu0 0
      %330 = vmatprep.mubr.bf16.mxu0 0
      %331 = vmatmul.mubr.bf16.gmra.mrb[0].mxu0 %v226
      %v332 = vpop.f32.mrb[0].mxu0
      %v333 = vadd.f32 %v248, %v332
      %v334 = vpop.f32.mrb[0].mxu0
      %v335 = vpop.f32.mrb[0].mxu0
      %v336 = vpop.f32.mrb[0].mxu0
      %337 = vdwg.mxu0
      %v338 = vmax.f32 %v333, 0.0
      %v339 = vpack.c.bf16 %v338, %v338
      %v340 = vld [vmem:[#allocation11] sm:$0xff]
      %v341 = vld [vmem:[#allocation11 + $0x8] sm:$0xff]
      %v342 = vld [vmem:[#allocation11 + $0x10] sm:$0xff]
      %v343 = vld [vmem:[#allocation11 + $0x18] sm:$0xff]
      %v344 = vld [vmem:[#allocation11 + $0x20] sm:$0xff]
      %v345 = vld [vmem:[#allocation11 + $0x28] sm:$0xff]
      %v346 = vld [vmem:[#allocation11 + $0x30] sm:$0xff]
      %v347 = vld [vmem:[#allocation11 + $0x38] sm:$0xff]
      %v348 = vld [vmem:[#allocation11 + $0x40] sm:$0xff]
      %v349 = vld [vmem:[#allocation11 + $0x48] sm:$0xff]
      %v350 = vld [vmem:[#allocation11 + $0x50] sm:$0xff]
      %v351 = vld [vmem:[#allocation11 + $0x58] sm:$0xff]
      %v352 = vld [vmem:[#allocation11 + $0x60] sm:$0xff]
      %v353 = vld [vmem:[#allocation11 + $0x68] sm:$0xff]
      %v354 = vld [vmem:[#allocation11 + $0x70] sm:$0xff]
      %v355 = vld [vmem:[#allocation11 + $0x78] sm:$0xff]
      %v356 = vld [vmem:[%s7] sm:$0x3]
      %v358 = vlaneseq
      %v359 = vshrl.u32 %v358, 7
      %v360 = vsub.s32 0, %v359
      %v361 = vrot.slane %v356, %v360
      %v362 = vlaneseq
      %v363 = vshrl.u32 %v362, 7
      %v364 = vsub.s32 1, %v363
      %v365 = vrot.slane %v356, %v364
      %v384 = vunpack.c.l.b16 %v340
      %v385 = vunpack.c.h.b16 %v340
      %v386 = vunpack.c.l.b16 %v341
      %v387 = vunpack.c.h.b16 %v341
      %v388 = vunpack.c.l.b16 %v342
      %v389 = vunpack.c.h.b16 %v342
      %v390 = vunpack.c.l.b16 %v343
      %v391 = vunpack.c.h.b16 %v343
      %v392 = vunpack.c.l.b16 %v344
      %v393 = vunpack.c.h.b16 %v344
      %v394 = vunpack.c.l.b16 %v345
      %v395 = vunpack.c.h.b16 %v345
      %v396 = vunpack.c.l.b16 %v346
      %v397 = vunpack.c.h.b16 %v346
      %v398 = vunpack.c.l.b16 %v347
      %v399 = vunpack.c.h.b16 %v347
      %v400 = vunpack.c.l.b16 %v348
      %v401 = vunpack.c.h.b16 %v348
      %v402 = vunpack.c.l.b16 %v349
      %v403 = vunpack.c.h.b16 %v349
      %v404 = vunpack.c.l.b16 %v350
      %v405 = vunpack.c.h.b16 %v350
      %v406 = vunpack.c.l.b16 %v351
      %v407 = vunpack.c.h.b16 %v351
      %v408 = vunpack.c.l.b16 %v352
      %v409 = vunpack.c.h.b16 %v352
      %v410 = vunpack.c.l.b16 %v353
      %v411 = vunpack.c.h.b16 %v353
      %v412 = vunpack.c.l.b16 %v354
      %v413 = vunpack.c.h.b16 %v354
      %v414 = vunpack.c.l.b16 %v355
      %v415 = vunpack.c.h.b16 %v355
      %v416 = vpack.c.b16 %v386, %v384
      %v417 = vpack.c.b16 %v387, %v385
      %v418 = vpack.c.b16 %v390, %v388
      %v419 = vpack.c.b16 %v391, %v389
      %v420 = vpack.c.b16 %v394, %v392
      %v421 = vpack.c.b16 %v395, %v393
      %v422 = vpack.c.b16 %v398, %v396
      %v423 = vpack.c.b16 %v399, %v397
      %v424 = vpack.c.b16 %v402, %v400
      %v425 = vpack.c.b16 %v403, %v401
      %v426 = vpack.c.b16 %v406, %v404
      %v427 = vpack.c.b16 %v407, %v405
      %v428 = vpack.c.b16 %v410, %v408
      %v429 = vpack.c.b16 %v411, %v409
      %v430 = vpack.c.b16 %v414, %v412
      %v431 = vpack.c.b16 %v415, %v413
      %448 = vmatprep.subr.bf16.mxu0 %v417
      %449 = vmatpush1.bf16.msra.mxu0 %v416
      %450 = vmatprep.subr.bf16.mxu0 %v419
      %451 = vmatpush1.bf16.msra.mxu0 %v418
      %452 = vmatprep.subr.bf16.mxu0 %v421
      %453 = vmatpush1.bf16.msra.mxu0 %v420
      %454 = vmatprep.subr.bf16.mxu0 %v423
      %455 = vmatpush1.bf16.msra.mxu0 %v422
      %456 = vmatprep.subr.bf16.mxu0 %v425
      %457 = vmatpush1.bf16.msra.mxu0 %v424
      %458 = vmatprep.subr.bf16.mxu0 %v427
      %459 = vmatpush1.bf16.msra.mxu0 %v426
      %460 = vmatprep.subr.bf16.mxu0 %v429
      %461 = vmatpush1.bf16.msra.mxu0 %v428
      %462 = vmatprep.subr.bf16.mxu0 %v431
      %463 = vmatpush1.bf16.msra.mxu0 %v430
      %464 = vmatprep.subr.bf16.mxu0 0
      %465 = vmatpush1.bf16.msra.mxu0 0
      %466 = vmatprep.subr.bf16.mxu0 0
      %467 = vmatpush1.bf16.msra.mxu0 0
      %468 = vmatprep.subr.bf16.mxu0 0
      %469 = vmatpush1.bf16.msra.mxu0 0
      %470 = vmatprep.subr.bf16.mxu0 0
      %471 = vmatpush1.bf16.msra.mxu0 0
      %472 = vmatprep.subr.bf16.mxu0 0
      %473 = vmatpush1.bf16.msra.mxu0 0
      %474 = vmatprep.subr.bf16.mxu0 0
      %475 = vmatpush1.bf16.msra.mxu0 0
      %476 = vmatprep.subr.bf16.mxu0 0
      %477 = vmatpush1.bf16.msra.mxu0 0
      %478 = vmatprep.subr.bf16.mxu0 0
      %479 = vmatpush1.bf16.msra.mxu0 0
      %480 = vmatprep.mubr.bf16.mxu0 0
      %481 = vmatmul.mubr.bf16.gmra.mrb[0].mxu0 %v339
      %v482 = vpop.f32.mrb[0].mxu0
      %v483 = vadd.f32 %v361, %v482
      %v484 = vpop.f32.mrb[0].mxu0
      %v485 = vadd.f32 %v365, %v484
      %v486 = vpop.f32.mrb[0].mxu0
      %v487 = vpop.f32.mrb[0].mxu0
      %488 = vdwg.mxu0
      %489 = vst [vmem:[#allocation13] sm:$0xff] %v483
      %490 = vst [vmem:[#allocation15] sm:$0xff] %v485
      %v491 = vld [vmem:[#allocation6] sm:$0xff]
      %v492 = vmul.f32 %v485, 0.5
      %v493 = vmul.f32 %v492, 1.442695
      %v494 = vpow.pop %v493
      %v495 = vmul.f32 %v491, %v494
      %v496 = vadd.f32 %v483, %v495
      %497 = vst [vmem:[#allocation12] sm:$0xff] %v496
    $region61: #{tpu_custom_call.1} parent=1 // pred_fallthru
      _
    // Predicated region
    $region62: #{tpu_custom_call.1} parent=1 // pred_check
      _
    $region63: #{tpu_custom_call.1} parent=1 // pred_check_branch
      %499 = sbr.rel (0) target = $region65
    $region64: #{tpu_custom_call.1} parent=1 // pred_region
      %s501 = ssub.s32 128, 128
      %502 = vsyncadd [#allocation5], %s501
      %s504 = sshll.u32 [#allocation12], 4
      %s505 = int_to_ptr.vmem [resolvable:$true] %s504
      %507 = dma.vmem_to_hbm [thread:$0]  %s505, 128, %s8, [#allocation5]
    $region65: #{tpu_custom_call.1} parent=1 // pred_fallthru
      _
    // Predicated region
    $region66: #{tpu_custom_call.1} parent=1 // pred_check
      _
    $region67: #{tpu_custom_call.1} parent=1 // pred_check_branch
      %509 = sbr.rel (0) target = $region69
    $region68: #{tpu_custom_call.1} parent=1 // pred_region
      %s511 = ssub.s32 128, 128
      %512 = vsyncadd [#allocation14], %s511
      %s514 = sshll.u32 [#allocation13], 4
      %s515 = int_to_ptr.vmem [resolvable:$true] %s514
      %517 = dma.vmem_to_hbm [thread:$0]  %s515, 128, %s9, [#allocation14]
    $region69: #{tpu_custom_call.1} parent=1 // pred_fallthru
      _
    // Predicated region
    $region70: #{tpu_custom_call.1} parent=1 // pred_check
      _
    $region71: #{tpu_custom_call.1} parent=1 // pred_check_branch
      %519 = sbr.rel (0) target = $region73
    $region72: #{tpu_custom_call.1} parent=1 // pred_region
      %s521 = ssub.s32 128, 128
      %522 = vsyncadd [#allocation14], %s521
      %s524 = sshll.u32 [#allocation15], 4
      %s525 = int_to_ptr.vmem [resolvable:$true] %s524
      %527 = dma.vmem_to_hbm [thread:$0]  %s525, 128, %s10, [#allocation14]
    $region73: #{tpu_custom_call.1} parent=1 // pred_fallthru
      _
    // Predicated region
    $region74: #{tpu_custom_call.1} parent=1 // pred_check
      _
    $region75: #{tpu_custom_call.1} parent=1 // pred_check_branch
      %529 = sbr.rel (0) target = $region77
    $region76: #{tpu_custom_call.1} parent=1 // pred_region
      %530 = dma.done [#allocation5], 128
    $region77: #{tpu_custom_call.1} parent=1 // pred_fallthru
      _
    // Predicated region
    $region78: #{tpu_custom_call.1} parent=1 // pred_check
      _
    $region79: #{tpu_custom_call.1} parent=1 // pred_check_branch
      %532 = sbr.rel (0) target = $region81
    $region80: #{tpu_custom_call.1} parent=1 // pred_region
      %533 = dma.done [#allocation14], 128
    $region81: #{tpu_custom_call.1} parent=1 // pred_fallthru
      _
    // Predicated region
    $region82: #{tpu_custom_call.1} parent=1 // pred_check
      _
    $region83: #{tpu_custom_call.1} parent=1 // pred_check_branch
      %535 = sbr.rel (0) target = $region85
    $region84: #{tpu_custom_call.1} parent=1 // pred_region
      %536 = dma.done [#allocation14], 128
    $region85: #{tpu_custom_call.1} parent=1 // pred_fallthru
      _
    %537 = vsyncpa [#allocation4], 1
    %538 = vsyncpa [#allocation7], 1
    %539 = vsyncpa [#allocation10], 1
    %540 = vsyncpa [#allocation5], 1
    %541 = vsyncpa [#allocation14], 1

// kernel: tpu_custom_call.1
$region0: #{tpu_custom_call.1}
  #allocation0 [shape = 'u32[]', space=smem, size = 0x4, offset = 0x4, fixed_abs, tag = 'smem constant byte address 0x4 - core index']
  #allocation1 [shape = 'u32[144,128]{1,0:T(1,128)}', space=vmem, size = 0x12000, scoped, tag = 'internal scratch']
  #allocation2 [shape = 'f32[8,128]{1,0:T(8,128)}', space=vmem, size = 0x1000, scoped, tag = 'scratch operand']
  %s0 = inlined_call_operand.hbm [shape: f32[8,128], index: 0, kind: input, shape index: {}]
  %s1 = inlined_call_operand.hbm [shape: f32[8,128], index: 1, kind: input, shape index: {}]
  %s2 = inlined_call_operand.hbm [shape: bf16[128,128], index: 2, kind: input, shape index: {}]
  %s3 = inlined_call_operand.vmem [shape: f32[1,128], index: 3, kind: input, shape index: {}]
  %s4 = inlined_call_operand.hbm [shape: bf16[128,128], index: 4, kind: input, shape index: {}]
  %s5 = inlined_call_operand.vmem [shape: f32[1,128], index: 5, kind: input, shape index: {}]
  %s6 = inlined_call_operand.hbm [shape: bf16[128,256], index: 6, kind: input, shape index: {}]
  %s7 = inlined_call_operand.vmem [shape: f32[1,256], index: 7, kind: input, shape index: {}]
  %s8 = inlined_call_operand.hbm [shape: f32[8,128], index: 8, kind: output, shape index: {0}]
  %s9 = inlined_call_operand.hbm [shape: f32[8,128], index: 9, kind: output, shape index: {1}]
  %s10 = inlined_call_operand.hbm [shape: f32[8,128], index: 10, kind: output, shape index: {2}]
  %11 = xla_tuple %s8, %s9, %s10
  %s12 = sld [smem:[#allocation0]]
  $region86: #{tpu_custom_call.1} parent=0
    _
  %s14 = ssub.s32 1, %s12
  %s15 = scalar_select 0, %s14, %s12
  $region1: #{tpu_custom_call.1} parent=0
    #allocation3 [shape = 'u8[4096]{0}', space=vmem, size = 0x1000, scoped, tag = 'input window, operand 0, single buffered']
    #allocation4 [shape = 's32[1]{0}', space=sflag, size = 0x4, scoped, tag = 'scoped memory for tpu_custom_call.1']
    #allocation5 [shape = 's32[1]{0}', space=sflag, size = 0x4, scoped, tag = 'scoped memory for tpu_custom_call.1']
    #allocation6 [shape = 'u8[4096]{0}', space=vmem, size = 0x1000, scoped, tag = 'input window, operand 1, single buffered']
    #allocation7 [shape = 's32[1]{0}', space=sflag, size = 0x4, scoped, tag = 'scoped memory for tpu_custom_call.1']
    #allocation8 [shape = 'u8[32768]{0}', space=vmem, size = 0x8000, scoped, tag = 'input window, operand 2, single buffered']
    #allocation9 [shape = 'u8[32768]{0}', space=vmem, size = 0x8000, scoped, tag = 'input window, operand 4, single buffered']
    #allocation10 [shape = 's32[1]{0}', space=sflag, size = 0x4, scoped, tag = 'scoped memory for tpu_custom_call.1']
    #allocation11 [shape = 'u8[65536]{0}', space=vmem, size = 0x10000, scoped, tag = 'input window, operand 6, single buffered']
    #allocation12 [shape = 'u8[4096]{0}', space=vmem, size = 0x1000, scoped, tag = 'output window, operand 0, single buffered']
    #allocation13 [shape = 'u8[4096]{0}', space=vmem, size = 0x1000, scoped, tag = 'output window, operand 1, single buffered']
    #allocation14 [shape = 's32[1]{0}', space=sflag, size = 0x4, scoped, tag = 'scoped memory for tpu_custom_call.1']
    #allocation15 [shape = 'u8[4096]{0}', space=vmem, size = 0x1000, scoped, tag = 'output window, operand 2, single buffered']
    %16 = vsyncpa [#allocation4], 0
    %17 = vsyncpa [#allocation7], 0
    %18 = vsyncpa [#allocation10], 0
    %19 = vsyncpa [#allocation5], 0
    %20 = vsyncpa [#allocation14], 0
    // Predicated region
    $region2: #{tpu_custom_call.1} parent=1 // pred_check
      _
    $region3: #{tpu_custom_call.1} parent=1 // pred_check_branch
      %22 = sbr.rel (0) target = $region5
    $region4: #{tpu_custom_call.1} parent=1 // pred_region
      %s24 = ssub.s32 128, 128
      %25 = vsyncadd [#allocation4], %s24
      %s27 = sshll.u32 [#allocation3], 4
      %s28 = int_to_ptr.vmem [resolvable:$true] %s27
      %30 = dma.hbm_to_vmem [thread:$0]  %s0, 128, %s28, [#allocation4]
    $region5: #{tpu_custom_call.1} parent=1 // pred_fallthru
      _
    // Predicated region
    $region6: #{tpu_custom_call.1} parent=1 // pred_check
      _
    $region7: #{tpu_custom_call.1} parent=1 // pred_check_branch
      %32 = sbr.rel (0) target = $region9
    $region8: #{tpu_custom_call.1} parent=1 // pred_region
      %s34 = ssub.s32 128, 128
      %35 = vsyncadd [#allocation7], %s34
      %s37 = sshll.u32 [#allocation6], 4
      %s38 = int_to_ptr.vmem [resolvable:$true] %s37
      %40 = dma.hbm_to_vmem [thread:$0]  %s1, 128, %s38, [#allocation7]
    $region9: #{tpu_custom_call.1} parent=1 // pred_fallthru
      _
    // Predicated region
    $region10: #{tpu_custom_call.1} parent=1 // pred_check
      _
    $region11: #{tpu_custom_call.1} parent=1 // pred_check_branch
      %42 = sbr.rel (0) target = $region13
    $region12: #{tpu_custom_call.1} parent=1 // pred_region
      %s44 = ssub.s32 1024, 1024
      %45 = vsyncadd [#allocation7], %s44
      %s46 = sshll.u32 [#allocation8], 4
      %s47 = int_to_ptr.vmem [resolvable:$true] %s46
      %52 = dma.hbm_to_vmem [thread:$0]  %s2, 1024, %s47, [#allocation7], 64, 64, 4
    $region13: #{tpu_custom_call.1} parent=1 // pred_fallthru
      _
    // Predicated region
    $region14: #{tpu_custom_call.1} parent=1 // pred_check
      _
    $region15: #{tpu_custom_call.1} parent=1 // pred_check_branch
      %54 = sbr.rel (0) target = $region17
    $region16: #{tpu_custom_call.1} parent=1 // pred_region
      _
    $region17: #{tpu_custom_call.1} parent=1 // pred_fallthru
      _
    // Predicated region
    $region18: #{tpu_custom_call.1} parent=1 // pred_check
      _
    $region19: #{tpu_custom_call.1} parent=1 // pred_check_branch
      %56 = sbr.rel (0) target = $region21
    $region20: #{tpu_custom_call.1} parent=1 // pred_region
      %s58 = ssub.s32 1024, 1024
      %59 = vsyncadd [#allocation10], %s58
      %s60 = sshll.u32 [#allocation9], 4
      %s61 = int_to_ptr.vmem [resolvable:$true] %s60
      %66 = dma.hbm_to_vmem [thread:$0]  %s4, 1024, %s61, [#allocation10], 64, 64, 4
    $region21: #{tpu_custom_call.1} parent=1 // pred_fallthru
      _
    // Predicated region
    $region22: #{tpu_custom_call.1} parent=1 // pred_check
      _
    $region23: #{tpu_custom_call.1} parent=1 // pred_check_branch
      %68 = sbr.rel (0) target = $region25
    $region24: #{tpu_custom_call.1} parent=1 // pred_region
      _
    $region25: #{tpu_custom_call.1} parent=1 // pred_fallthru
      _
    // Predicated region
    $region26: #{tpu_custom_call.1} parent=1 // pred_check
      _
    $region27: #{tpu_custom_call.1} parent=1 // pred_check_branch
      %70 = sbr.rel (0) target = $region29
    $region28: #{tpu_custom_call.1} parent=1 // pred_region
      %s72 = ssub.s32 2048, 2048
      %73 = vsyncadd [#allocation10], %s72
      %s74 = sshll.u32 [#allocation11], 4
      %s75 = int_to_ptr.vmem [resolvable:$true] %s74
      %80 = dma.hbm_to_vmem [thread:$0]  %s6, 2048, %s75, [#allocation10], 128, 128, 8
    $region29: #{tpu_custom_call.1} parent=1 // pred_fallthru
      _
    // Predicated region
    $region30: #{tpu_custom_call.1} parent=1 // pred_check
      _
    $region31: #{tpu_custom_call.1} parent=1 // pred_check_branch
      %82 = sbr.rel (0) target = $region33
    $region32: #{tpu_custom_call.1} parent=1 // pred_region
      _
    $region33: #{tpu_custom_call.1} parent=1 // pred_fallthru
      _
    // Predicated region
    $region34: #{tpu_custom_call.1} parent=1 // pred_check
      _
    $region35: #{tpu_custom_call.1} parent=1 // pred_check_branch
      %84 = sbr.rel (0) target = $region37
    $region36: #{tpu_custom_call.1} parent=1 // pred_region
      %85 = dma.done [#allocation4], 128
    $region37: #{tpu_custom_call.1} parent=1 // pred_fallthru
      _
    // Predicated region
    $region38: #{tpu_custom_call.1} parent=1 // pred_check
      _
    $region39: #{tpu_custom_call.1} parent=1 // pred_check_branch
      %87 = sbr.rel (0) target = $region41
    $region40: #{tpu_custom_call.1} parent=1 // pred_region
      %88 = dma.done [#allocation7], 128
    $region41: #{tpu_custom_call.1} parent=1 // pred_fallthru
      _
    // Predicated region
    $region42: #{tpu_custom_call.1} parent=1 // pred_check
      _
    $region43: #{tpu_custom_call.1} parent=1 // pred_check_branch
      %90 = sbr.rel (0) target = $region45
    $region44: #{tpu_custom_call.1} parent=1 // pred_region
      %91 = dma.done [#allocation7], 1024
    $region45: #{tpu_custom_call.1} parent=1 // pred_fallthru
      _
    // Predicated region
    $region46: #{tpu_custom_call.1} parent=1 // pred_check
      _
    $region47: #{tpu_custom_call.1} parent=1 // pred_check_branch
      %93 = sbr.rel (0) target = $region49
    $region48: #{tpu_custom_call.1} parent=1 // pred_region
      %94 = dma.done [#allocation10], 1024
    $region49: #{tpu_custom_call.1} parent=1 // pred_fallthru
      _
    // Predicated region
    $region50: #{tpu_custom_call.1} parent=1 // pred_check
      _
    $region51: #{tpu_custom_call.1} parent=1 // pred_check_branch
      %96 = sbr.rel (0) target = $region53
    $region52: #{tpu_custom_call.1} parent=1 // pred_region
      %97 = dma.done [#allocation10], 2048
    $region53: #{tpu_custom_call.1} parent=1 // pred_fallthru
      _
    %p99 = scmp.eq.s32.totalorder 0, 0
    // Predicated region
    $region54: #{tpu_custom_call.1} parent=1 // pred_check
      %p100 = pneg %p99
    $region55: #{tpu_custom_call.1} parent=1 // pred_check_branch
      %102 = sbr.rel (%p100) target = $region57
    $region56: #{tpu_custom_call.1} parent=1 // pred_region
      %103 = vst [vmem:[#allocation2] sm:$0xff] 0.0
    $region57: #{tpu_custom_call.1} parent=1 // pred_fallthru
      _
    %v104 = vld [vmem:[#allocation2] sm:$0xff]
    %v105 = vld [vmem:[#allocation3] sm:$0xff]
    %v106 = vpack.c.bf16 %v105, %v105
    %v107 = vld [vmem:[#allocation8] sm:$0xf]
    %v108 = vld [vmem:[#allocation8 + $0x4] sm:$0xf]
    %v109 = vld [vmem:[#allocation8 + $0x8] sm:$0xf]
    %v110 = vld [vmem:[#allocation8 + $0xc] sm:$0xf]
    %v111 = vld [vmem:[#allocation8 + $0x10] sm:$0xf]
    %v112 = vld [vmem:[#allocation8 + $0x14] sm:$0xf]
    %v113 = vld [vmem:[#allocation8 + $0x18] sm:$0xf]
    %v114 = vld [vmem:[#allocation8 + $0x1c] sm:$0xf]
    %v115 = vld [vmem:[#allocation8 + $0x20] sm:$0xf]
    %v116 = vld [vmem:[#allocation8 + $0x24] sm:$0xf]
    %v117 = vld [vmem:[#allocation8 + $0x28] sm:$0xf]
    %v118 = vld [vmem:[#allocation8 + $0x2c] sm:$0xf]
    %v119 = vld [vmem:[#allocation8 + $0x30] sm:$0xf]
    %v120 = vld [vmem:[#allocation8 + $0x34] sm:$0xf]
    %v121 = vld [vmem:[#allocation8 + $0x38] sm:$0xf]
    %v122 = vld [vmem:[#allocation8 + $0x3c] sm:$0xf]
    %v139 = vunpack.c.l.b16 %v107
    %v140 = vunpack.c.l.b16 %v108
    %v141 = vunpack.c.l.b16 %v109
    %v142 = vunpack.c.l.b16 %v110
    %v143 = vunpack.c.l.b16 %v111
    %v144 = vunpack.c.l.b16 %v112
    %v145 = vunpack.c.l.b16 %v113
    %v146 = vunpack.c.l.b16 %v114
    %v147 = vunpack.c.l.b16 %v115
    %v148 = vunpack.c.l.b16 %v116
    %v149 = vunpack.c.l.b16 %v117
    %v150 = vunpack.c.l.b16 %v118
    %v151 = vunpack.c.l.b16 %v119
    %v152 = vunpack.c.l.b16 %v120
    %v153 = vunpack.c.l.b16 %v121
    %v154 = vunpack.c.l.b16 %v122
    %v155 = vpack.c.b16 %v140, %v139
    %v156 = vpack.c.b16 %v142, %v141
    %v157 = vpack.c.b16 %v144, %v143
    %v158 = vpack.c.b16 %v146, %v145
    %v159 = vpack.c.b16 %v148, %v147
    %v160 = vpack.c.b16 %v150, %v149
    %v161 = vpack.c.b16 %v152, %v151
    %v162 = vpack.c.b16 %v154, %v153
    %171 = vmatprep.subr.bf16.mxu0 0
    %172 = vmatpush1.bf16.msra.mxu0 %v155
    %173 = vmatprep.subr.bf16.mxu0 0
    %174 = vmatpush1.bf16.msra.mxu0 %v156
    %175 = vmatprep.subr.bf16.mxu0 0
    %176 = vmatpush1.bf16.msra.mxu0 %v157
    %177 = vmatprep.subr.bf16.mxu0 0
    %178 = vmatpush1.bf16.msra.mxu0 %v158
    %179 = vmatprep.subr.bf16.mxu0 0
    %180 = vmatpush1.bf16.msra.mxu0 %v159
    %181 = vmatprep.subr.bf16.mxu0 0
    %182 = vmatpush1.bf16.msra.mxu0 %v160
    %183 = vmatprep.subr.bf16.mxu0 0
    %184 = vmatpush1.bf16.msra.mxu0 %v161
    %185 = vmatprep.subr.bf16.mxu0 0
    %186 = vmatpush1.bf16.msra.mxu0 %v162
    %187 = vmatprep.subr.bf16.mxu0 0
    %188 = vmatpush1.bf16.msra.mxu0 0
    %189 = vmatprep.subr.bf16.mxu0 0
    %190 = vmatpush1.bf16.msra.mxu0 0
    %191 = vmatprep.subr.bf16.mxu0 0
    %192 = vmatpush1.bf16.msra.mxu0 0
    %193 = vmatprep.subr.bf16.mxu0 0
    %194 = vmatpush1.bf16.msra.mxu0 0
    %195 = vmatprep.subr.bf16.mxu0 0
    %196 = vmatpush1.bf16.msra.mxu0 0
    %197 = vmatprep.subr.bf16.mxu0 0
    %198 = vmatpush1.bf16.msra.mxu0 0
    %199 = vmatprep.subr.bf16.mxu0 0
    %200 = vmatpush1.bf16.msra.mxu0 0
    %201 = vmatprep.subr.bf16.mxu0 0
    %202 = vmatpush1.bf16.msra.mxu0 0
    %203 = vmatprep.mubr.bf16.mxu0 0
    %204 = vmatmul.mubr.bf16.gmra.mrb[0].mxu0 %v106
    %v205 = vpop.f32.mrb[0].mxu0
    %v206 = vadd.f32 0.0, %v205
    %v207 = vpop.f32.mrb[0].mxu0
    %v208 = vpop.f32.mrb[0].mxu0
    %v209 = vpop.f32.mrb[0].mxu0
    %210 = vdwg.mxu0
    %v211 = vadd.f32 %v104, %v206
    %212 = vst [vmem:[#allocation2] sm:$0xff] %v211
    // Predicated region
    $region58: #{tpu_custom_call.1} parent=1 // pred_check
      %p213 = pneg %p99
    $region59: #{tpu_custom_call.1} parent=1 // pred_check_branch
      %215 = sbr.rel (%p213) target = $region61
    $region60: #{tpu_custom_call.1} parent=1 // pred_region
      %v216 = vld [vmem:[#allocation2] sm:$0xff]
      %v217 = vld [vmem:[%s3] sm:$0x1]
      %v219 = vlaneseq
      %v220 = vshrl.u32 %v219, 7
      %v221 = vsub.s32 0, %v220
      %v222 = vrot.slane %v217, %v221
      %v224 = vadd.f32 %v216, %v222
      %v225 = vmax.f32 %v224, 0.0
      %v226 = vpack.c.bf16 %v225, %v225
      %v227 = vld [vmem:[#allocation9] sm:$0xf]
      %v228 = vld [vmem:[#allocation9 + $0x4] sm:$0xf]
      %v229 = vld [vmem:[#allocation9 + $0x8] sm:$0xf]
      %v230 = vld [vmem:[#allocation9 + $0xc] sm:$0xf]
      %v231 = vld [vmem:[#allocation9 + $0x10] sm:$0xf]
      %v232 = vld [vmem:[#allocation9 + $0x14] sm:$0xf]
      %v233 = vld [vmem:[#allocation9 + $0x18] sm:$0xf]
      %v234 = vld [vmem:[#allocation9 + $0x1c] sm:$0xf]
      %v235 = vld [vmem:[#allocation9 + $0x20] sm:$0xf]
      %v236 = vld [vmem:[#allocation9 + $0x24] sm:$0xf]
      %v237 = vld [vmem:[#allocation9 + $0x28] sm:$0xf]
      %v238 = vld [vmem:[#allocation9 + $0x2c] sm:$0xf]
      %v239 = vld [vmem:[#allocation9 + $0x30] sm:$0xf]
      %v240 = vld [vmem:[#allocation9 + $0x34] sm:$0xf]
      %v241 = vld [vmem:[#allocation9 + $0x38] sm:$0xf]
      %v242 = vld [vmem:[#allocation9 + $0x3c] sm:$0xf]
      %v243 = vld [vmem:[%s5] sm:$0x1]
      %v245 = vlaneseq
      %v246 = vshrl.u32 %v245, 7
      %v247 = vsub.s32 0, %v246
      %v248 = vrot.slane %v243, %v247
      %v266 = vunpack.c.l.b16 %v227
      %v267 = vunpack.c.l.b16 %v228
      %v268 = vunpack.c.l.b16 %v229
      %v269 = vunpack.c.l.b16 %v230
      %v270 = vunpack.c.l.b16 %v231
      %v271 = vunpack.c.l.b16 %v232
      %v272 = vunpack.c.l.b16 %v233
      %v273 = vunpack.c.l.b16 %v234
      %v274 = vunpack.c.l.b16 %v235
      %v275 = vunpack.c.l.b16 %v236
      %v276 = vunpack.c.l.b16 %v237
      %v277 = vunpack.c.l.b16 %v238
      %v278 = vunpack.c.l.b16 %v239
      %v279 = vunpack.c.l.b16 %v240
      %v280 = vunpack.c.l.b16 %v241
      %v281 = vunpack.c.l.b16 %v242
      %v282 = vpack.c.b16 %v267, %v266
      %v283 = vpack.c.b16 %v269, %v268
      %v284 = vpack.c.b16 %v271, %v270
      %v285 = vpack.c.b16 %v273, %v272
      %v286 = vpack.c.b16 %v275, %v274
      %v287 = vpack.c.b16 %v277, %v276
      %v288 = vpack.c.b16 %v279, %v278
      %v289 = vpack.c.b16 %v281, %v280
      %298 = vmatprep.subr.bf16.mxu0 0
      %299 = vmatpush1.bf16.msra.mxu0 %v282
      %300 = vmatprep.subr.bf16.mxu0 0
      %301 = vmatpush1.bf16.msra.mxu0 %v283
      %302 = vmatprep.subr.bf16.mxu0 0
      %303 = vmatpush1.bf16.msra.mxu0 %v284
      %304 = vmatprep.subr.bf16.mxu0 0
      %305 = vmatpush1.bf16.msra.mxu0 %v285
      %306 = vmatprep.subr.bf16.mxu0 0
      %307 = vmatpush1.bf16.msra.mxu0 %v286
      %308 = vmatprep.subr.bf16.mxu0 0
      %309 = vmatpush1.bf16.msra.mxu0 %v287
      %310 = vmatprep.subr.bf16.mxu0 0
      %311 = vmatpush1.bf16.msra.mxu0 %v288
      %312 = vmatprep.subr.bf16.mxu0 0
      %313 = vmatpush1.bf16.msra.mxu0 %v289
      %314 = vmatprep.subr.bf16.mxu0 0
      %315 = vmatpush1.bf16.msra.mxu0 0
      %316 = vmatprep.subr.bf16.mxu0 0
      %317 = vmatpush1.bf16.msra.mxu0 0
      %318 = vmatprep.subr.bf16.mxu0 0
      %319 = vmatpush1.bf16.msra.mxu0 0
      %320 = vmatprep.subr.bf16.mxu0 0
      %321 = vmatpush1.bf16.msra.mxu0 0
      %322 = vmatprep.subr.bf16.mxu0 0
      %323 = vmatpush1.bf16.msra.mxu0 0
      %324 = vmatprep.subr.bf16.mxu0 0
      %325 = vmatpush1.bf16.msra.mxu0 0
      %326 = vmatprep.subr.bf16.mxu0 0
      %327 = vmatpush1.bf16.msra.mxu0 0
      %328 = vmatprep.subr.bf16.mxu0 0
      %329 = vmatpush1.bf16.msra.mxu0 0
      %330 = vmatprep.mubr.bf16.mxu0 0
      %331 = vmatmul.mubr.bf16.gmra.mrb[0].mxu0 %v226
      %v332 = vpop.f32.mrb[0].mxu0
      %v333 = vadd.f32 %v248, %v332
      %v334 = vpop.f32.mrb[0].mxu0
      %v335 = vpop.f32.mrb[0].mxu0
      %v336 = vpop.f32.mrb[0].mxu0
      %337 = vdwg.mxu0
      %v338 = vmax.f32 %v333, 0.0
      %v339 = vpack.c.bf16 %v338, %v338
      %v340 = vld [vmem:[#allocation11] sm:$0xff]
      %v341 = vld [vmem:[#allocation11 + $0x8] sm:$0xff]
      %v342 = vld [vmem:[#allocation11 + $0x10] sm:$0xff]
      %v343 = vld [vmem:[#allocation11 + $0x18] sm:$0xff]
      %v344 = vld [vmem:[#allocation11 + $0x20] sm:$0xff]
      %v345 = vld [vmem:[#allocation11 + $0x28] sm:$0xff]
      %v346 = vld [vmem:[#allocation11 + $0x30] sm:$0xff]
      %v347 = vld [vmem:[#allocation11 + $0x38] sm:$0xff]
      %v348 = vld [vmem:[#allocation11 + $0x40] sm:$0xff]
      %v349 = vld [vmem:[#allocation11 + $0x48] sm:$0xff]
      %v350 = vld [vmem:[#allocation11 + $0x50] sm:$0xff]
      %v351 = vld [vmem:[#allocation11 + $0x58] sm:$0xff]
      %v352 = vld [vmem:[#allocation11 + $0x60] sm:$0xff]
      %v353 = vld [vmem:[#allocation11 + $0x68] sm:$0xff]
      %v354 = vld [vmem:[#allocation11 + $0x70] sm:$0xff]
      %v355 = vld [vmem:[#allocation11 + $0x78] sm:$0xff]
      %v356 = vld [vmem:[%s7] sm:$0x3]
      %v358 = vlaneseq
      %v359 = vshrl.u32 %v358, 7
      %v360 = vsub.s32 0, %v359
      %v361 = vrot.slane %v356, %v360
      %v362 = vlaneseq
      %v363 = vshrl.u32 %v362, 7
      %v364 = vsub.s32 1, %v363
      %v365 = vrot.slane %v356, %v364
      %v384 = vunpack.c.l.b16 %v340
      %v385 = vunpack.c.h.b16 %v340
      %v386 = vunpack.c.l.b16 %v341
      %v387 = vunpack.c.h.b16 %v341
      %v388 = vunpack.c.l.b16 %v342
      %v389 = vunpack.c.h.b16 %v342
      %v390 = vunpack.c.l.b16 %v343
      %v391 = vunpack.c.h.b16 %v343
      %v392 = vunpack.c.l.b16 %v344
      %v393 = vunpack.c.h.b16 %v344
      %v394 = vunpack.c.l.b16 %v345
      %v395 = vunpack.c.h.b16 %v345
      %v396 = vunpack.c.l.b16 %v346
      %v397 = vunpack.c.h.b16 %v346
      %v398 = vunpack.c.l.b16 %v347
      %v399 = vunpack.c.h.b16 %v347
      %v400 = vunpack.c.l.b16 %v348
      %v401 = vunpack.c.h.b16 %v348
      %v402 = vunpack.c.l.b16 %v349
      %v403 = vunpack.c.h.b16 %v349
      %v404 = vunpack.c.l.b16 %v350
      %v405 = vunpack.c.h.b16 %v350
      %v406 = vunpack.c.l.b16 %v351
      %v407 = vunpack.c.h.b16 %v351
      %v408 = vunpack.c.l.b16 %v352
      %v409 = vunpack.c.h.b16 %v352
      %v410 = vunpack.c.l.b16 %v353
      %v411 = vunpack.c.h.b16 %v353
      %v412 = vunpack.c.l.b16 %v354
      %v413 = vunpack.c.h.b16 %v354
      %v414 = vunpack.c.l.b16 %v355
      %v415 = vunpack.c.h.b16 %v355
      %v416 = vpack.c.b16 %v386, %v384
      %v417 = vpack.c.b16 %v387, %v385
      %v418 = vpack.c.b16 %v390, %v388
      %v419 = vpack.c.b16 %v391, %v389
      %v420 = vpack.c.b16 %v394, %v392
      %v421 = vpack.c.b16 %v395, %v393
      %v422 = vpack.c.b16 %v398, %v396
      %v423 = vpack.c.b16 %v399, %v397
      %v424 = vpack.c.b16 %v402, %v400
      %v425 = vpack.c.b16 %v403, %v401
      %v426 = vpack.c.b16 %v406, %v404
      %v427 = vpack.c.b16 %v407, %v405
      %v428 = vpack.c.b16 %v410, %v408
      %v429 = vpack.c.b16 %v411, %v409
      %v430 = vpack.c.b16 %v414, %v412
      %v431 = vpack.c.b16 %v415, %v413
      %448 = vmatprep.subr.bf16.mxu0 %v417
      %449 = vmatpush1.bf16.msra.mxu0 %v416
      %450 = vmatprep.subr.bf16.mxu0 %v419
      %451 = vmatpush1.bf16.msra.mxu0 %v418
      %452 = vmatprep.subr.bf16.mxu0 %v421
      %453 = vmatpush1.bf16.msra.mxu0 %v420
      %454 = vmatprep.subr.bf16.mxu0 %v423
      %455 = vmatpush1.bf16.msra.mxu0 %v422
      %456 = vmatprep.subr.bf16.mxu0 %v425
      %457 = vmatpush1.bf16.msra.mxu0 %v424
      %458 = vmatprep.subr.bf16.mxu0 %v427
      %459 = vmatpush1.bf16.msra.mxu0 %v426
      %460 = vmatprep.subr.bf16.mxu0 %v429
      %461 = vmatpush1.bf16.msra.mxu0 %v428
      %462 = vmatprep.subr.bf16.mxu0 %v431
      %463 = vmatpush1.bf16.msra.mxu0 %v430
      %464 = vmatprep.subr.bf16.mxu0 0
      %465 = vmatpush1.bf16.msra.mxu0 0
      %466 = vmatprep.subr.bf16.mxu0 0
      %467 = vmatpush1.bf16.msra.mxu0 0
      %468 = vmatprep.subr.bf16.mxu0 0
      %469 = vmatpush1.bf16.msra.mxu0 0
      %470 = vmatprep.subr.bf16.mxu0 0
      %471 = vmatpush1.bf16.msra.mxu0 0
      %472 = vmatprep.subr.bf16.mxu0 0
      %473 = vmatpush1.bf16.msra.mxu0 0
      %474 = vmatprep.subr.bf16.mxu0 0
      %475 = vmatpush1.bf16.msra.mxu0 0
      %476 = vmatprep.subr.bf16.mxu0 0
      %477 = vmatpush1.bf16.msra.mxu0 0
      %478 = vmatprep.subr.bf16.mxu0 0
      %479 = vmatpush1.bf16.msra.mxu0 0
      %480 = vmatprep.mubr.bf16.mxu0 0
      %481 = vmatmul.mubr.bf16.gmra.mrb[0].mxu0 %v339
      %v482 = vpop.f32.mrb[0].mxu0
      %v483 = vadd.f32 %v361, %v482
      %v484 = vpop.f32.mrb[0].mxu0
      %v485 = vadd.f32 %v365, %v484
      %v486 = vpop.f32.mrb[0].mxu0
      %v487 = vpop.f32.mrb[0].mxu0
      %488 = vdwg.mxu0
      %489 = vst [vmem:[#allocation13] sm:$0xff] %v483
      %490 = vst [vmem:[#allocation15] sm:$0xff] %v485
      %v491 = vld [vmem:[#allocation6] sm:$0xff]
      %v492 = vmul.f32 %v485, 0.5
      %v493 = vmul.f32 %v492, 1.442695
      %v494 = vpow.pop %v493
      %v495 = vmul.f32 %v491, %v494
      %v496 = vadd.f32 %v483, %v495
      %497 = vst [vmem:[#allocation12] sm:$0xff] %v496
    $region61: #{tpu_custom_call.1} parent=1 // pred_fallthru
      _
    // Predicated region
    $region62: #{tpu_custom_call.1} parent=1 // pred_check
      _
    $region63: #{tpu_custom_call.1} parent=1 // pred_check_branch
      %499 = sbr.rel (0) target = $region65
    $region64: #{tpu_custom_call.1} parent=1 // pred_region
      %s501 = ssub.s32 128, 128
      %502 = vsyncadd [#allocation5], %s501
      %s504 = sshll.u32 [#allocation12], 4
      %s505 = int_to_ptr.vmem [resolvable:$true] %s504
      %507 = dma.vmem_to_hbm [thread:$0]  %s505, 128, %s8, [#allocation5]
    $region65: #{tpu_custom_call.1} parent=1 // pred_fallthru
      _
    // Predicated region
    $region66: #{tpu_custom_call.1} parent=1 // pred_check
      _
    $region67: #{tpu_custom_call.1} parent=1 // pred_check_branch
      %509 = sbr.rel (0) target = $region69
    $region68: #{tpu_custom_call.1} parent=1 // pred_region
      %s511 = ssub.s32 128, 128
      %512 = vsyncadd [#allocation14], %s511
      %s514 = sshll.u32 [#allocation13], 4
      %s515 = int_to_ptr.vmem [resolvable:$true] %s514
      %517 = dma.vmem_to_hbm [thread:$0]  %s515, 128, %s9, [#allocation14]
    $region69: #{tpu_custom_call.1} parent=1 // pred_fallthru
      _
    // Predicated region
    $region70: #{tpu_custom_call.1} parent=1 // pred_check
      _
    $region71: #{tpu_custom_call.1} parent=1 // pred_check_branch
      %519 = sbr.rel (0) target = $region73
    $region72: #{tpu_custom_call.1} parent=1 // pred_region
      %s521 = ssub.s32 128, 128
      %522 = vsyncadd [#allocation14], %s521
      %s524 = sshll.u32 [#allocation15], 4
      %s525 = int_to_ptr.vmem [resolvable:$true] %s524
      %527 = dma.vmem_to_hbm [thread:$0]  %s525, 128, %s10, [#allocation14]
    $region73: #{tpu_custom_call.1} parent=1 // pred_fallthru
      _
    // Predicated region
    $region74: #{tpu_custom_call.1} parent=1 // pred_check
      _
    $region75: #{tpu_custom_call.1} parent=1 // pred_check_branch
      %529 = sbr.rel (0) target = $region77
    $region76: #{tpu_custom_call.1} parent=1 // pred_region
      %530 = dma.done [#allocation5], 128
    $region77: #{tpu_custom_call.1} parent=1 // pred_fallthru
      _
    // Predicated region
    $region78: #{tpu_custom_call.1} parent=1 // pred_check
      _
    $region79: #{tpu_custom_call.1} parent=1 // pred_check_branch
      %532 = sbr.rel (0) target = $region81
    $region80: #{tpu_custom_call.1} parent=1 // pred_region
      %533 = dma.done [#allocation14], 128
    $region81: #{tpu_custom_call.1} parent=1 // pred_fallthru
      _
    // Predicated region
    $region82: #{tpu_custom_call.1} parent=1 // pred_check
      _
    $region83: #{tpu_custom_call.1} parent=1 // pred_check_branch
      %535 = sbr.rel (0) target = $region85
    $region84: #{tpu_custom_call.1} parent=1 // pred_region
      %536 = dma.done [#allocation14], 128
    $region85: #{tpu_custom_call.1} parent=1 // pred_fallthru
      _
    %537 = vsyncpa [#allocation4], 1
    %538 = vsyncpa [#allocation7], 1
    %539 = vsyncpa [#allocation10], 1
    %540 = vsyncpa [#allocation5], 1
    %541 = vsyncpa [#allocation14], 1

</llo_original>
